<compile_context>
chip_gen: v6e
topology: v6e:2x2x1
jax: 0.10.0
libtpu: 0.0.40
codegen_flags: <defaults>
</compile_context>

<pallas_src>
import functools

import jax
import jax.numpy as jnp
from jax import lax
from jax.experimental import pallas as pl
from jax.experimental.pallas import tpu as pltpu


def _res_block_crop_kernel(x_ref, w1_ref, w2c_ref, bias_ref, out_ref,
                           xs_ref, hs_ref, *, B, W, Cin, Cout, Wh1, npix):
    """One grid step = B images.

    x_ref   : (B, Cin, Xw)            bf16  zero-padded flat-pixel input
    w1_ref  : (Cout, 9*Cin)           bf16  conv1 weights * BN1 scale
    w2c_ref : (Cout, 9*Cout + Cin)    bf16  [conv2*BN2 scale | shortcut*BNs scale]
    bias_ref: (Cout, 2)               f32   [:,0] = BN1 bias, [:,1] = BN2+BNs bias
    out_ref : (B, Cout, npix)         f32   flat-pixel output (crop region is
                                            rows/cols < H-4 / W-4 of the HxW grid)
    xs_ref  : (9*Cin, B*Wh1)          bf16  scratch: shifted input stack
    hs_ref  : (9*Cout + Cin, B*npix)  bf16  scratch: conv2 stack + shortcut rows
    """
    shifts = [ky * W + kx for ky in range(3) for kx in range(3)]
    smax = 2 * W + 2

    # 9-tap shifted input stack (taps-outer, channels-inner), built in VMEM.
    for b in range(B):
        xb = x_ref[b]                                     # (Cin, Xw) bf16
        col = b * Wh1
        for t, s in enumerate(shifts):
            xs_ref[t * Cin:(t + 1) * Cin, col:col + Wh1] = xb[:, s:s + Wh1]
        # Shortcut rows: the 1x1 conv input is x shifted by the crop offset
        # 2*W + 2, i.e. exactly tap (ky,kx)=(2,2); append as the last K rows.
        hs_ref[9 * Cout:, b * npix:(b + 1) * npix] = xb[:, smax:smax + npix]

    # conv1 (+ folded BN1 scale) as ONE matmul over all B images, K = 9*Cin.
    h1 = jnp.dot(w1_ref[...], xs_ref[...], preferred_element_type=jnp.float32)
    h1 = jnp.maximum(h1 + bias_ref[:, 0:1], 0.0).astype(jnp.bfloat16)

    # conv2's 9-tap stack sliced directly from the h1 value (single bf16 cast,
    # no intermediate h1 store/reload).
    for b in range(B):
        src = b * Wh1
        dst = b * npix
        for t, s in enumerate(shifts):
            hs_ref[t * Cout:(t + 1) * Cout, dst:dst + npix] = \
                h1[:, src + s:src + s + npix]

    # conv2 + 1x1 shortcut fused into ONE matmul (K = 9*Cout + Cin), then a
    # single combined bias + ReLU.
    # TODO(synk): only activation=F.relu is implemented.
    h2 = jnp.dot(w2c_ref[...], hs_ref[...], preferred_element_type=jnp.float32)
    h2 = jnp.maximum(h2 + bias_ref[:, 1:2], 0.0)

    for b in range(B):
        out_ref[b] = h2[:, b * npix:(b + 1) * npix].astype(out_ref.dtype)


def residual_block_crop_forward(x_nchw, params, *, stride=1, kernel_size=3):
    """x_nchw: (N, Cin, H, W) f32.  Returns (N, Cout, H-4, W-4) f32 (NCHW)."""
    # TODO(synk): stride != 1 and kernel_size != 3 variants are not implemented.
    assert stride == 1 and kernel_size == 3
    eps = 1e-5
    N, Cin, H, W = x_nchw.shape
    Cout = params['conv1_w'].shape[0]
    p = (kernel_size - 1) // 2                     # = 1
    Hc, Wc = H - 4 * p, W - 4 * p                  # cropped output spatial dims

    npix = H * W
    smax = 2 * W + 2                               # largest tap shift (ky=kx=2)
    lane = 128
    Wh1 = pl.cdiv(npix + smax, lane) * lane        # per-image h1 chunk width (384)
    Xw = pl.cdiv(Wh1 + smax, lane) * lane          # per-image padded x width (512)

    # Images per grid step: amortize per-step overhead, but keep >= 2 grid
    # steps when N >= 2 so both v7x TensorCores are used (no-op on v5e/v6e).
    max_b = 16                                     # ~4 MiB VMEM at B=16
    B = max(1, min(max_b, pl.cdiv(N, 2))) if N >= 2 else 1
    steps = pl.cdiv(N, B)
    Npad = steps * B

    # Fold BatchNorms (inference-mode running statistics) into scale + bias.
    def fold(prefix):
        s = params[prefix + '_gamma'] / jnp.sqrt(params[prefix + '_var'] + eps)
        b = params[prefix + '_beta'] - params[prefix + '_mean'] * s
        return s.astype(jnp.float32)[:, None], b.astype(jnp.float32)[:, None]

    s1, b1 = fold('bn1')
    s2, b2 = fold('bn2')

    if stride != 1 or Cin != Cout:
        wsc = params['convsc_w'][:, :, 0, 0].astype(jnp.float32)
        ssc, bsc = fold('bnsc')
    else:
        # Identity shortcut: exact in bf16 (rows of eye / scale 1 round-trip).
        wsc = jnp.eye(Cout, dtype=jnp.float32)
        ssc = jnp.ones((Cout, 1), jnp.float32)
        bsc = jnp.zeros((Cout, 1), jnp.float32)

    # Conv weights in matmul form (taps-outer, channels-inner); BN scales
    # folded in f32 BEFORE the bf16 cast.  Shortcut rows go LAST so they land
    # in conv2's second, under-full K pass on the 256-deep MXUs.
    w1 = jnp.transpose(params['conv1_w'], (0, 2, 3, 1)).reshape(Cout, 9 * Cin)
    w2 = jnp.transpose(params['conv2_w'], (0, 2, 3, 1)).reshape(Cout, 9 * Cout)
    w1s = (w1.astype(jnp.float32) * s1).astype(jnp.bfloat16)
    w2c = jnp.concatenate([w2.astype(jnp.float32) * s2, wsc * ssc],
                          axis=1).astype(jnp.bfloat16)
    biases = jnp.concatenate([b1, b2 + bsc], axis=1)         # (Cout, 2) f32

    # Flat-pixel, zero-padded bf16 input (single small fused pad+cast in XLA;
    # the 9-tap stacks are built in-kernel).
    x_flat = x_nchw.reshape(N, Cin, npix).astype(jnp.float32)
    x_in = jnp.pad(x_flat, ((0, Npad - N), (0, 0), (0, Xw - npix)))
    x_in = x_in.astype(jnp.bfloat16)

    kernel = functools.partial(_res_block_crop_kernel, B=B, W=W, Cin=Cin,
                               Cout=Cout, Wh1=Wh1, npix=npix)

    out_flat = pl.pallas_call(
        kernel,
        out_shape=jax.ShapeDtypeStruct((Npad, Cout, npix), jnp.float32),
        grid_spec=pltpu.PrefetchScalarGridSpec(
            num_scalar_prefetch=0,
            grid=(steps,),
            in_specs=[
                pl.BlockSpec((B, Cin, Xw), lambda n: (n, 0, 0)),
                pl.BlockSpec((Cout, 9 * Cin), lambda n: (0, 0)),
                pl.BlockSpec((Cout, 9 * Cout + Cin), lambda n: (0, 0)),
                pl.BlockSpec((Cout, 2), lambda n: (0, 0)),
            ],
            out_specs=pl.BlockSpec((B, Cout, npix), lambda n: (n, 0, 0)),
            scratch_shapes=[
                pltpu.VMEM((9 * Cin, B * Wh1), jnp.bfloat16),
                pltpu.VMEM((9 * Cout + Cin, B * npix), jnp.bfloat16),
            ],
        ),
        compiler_params=pltpu.CompilerParams(
            dimension_semantics=("parallel",)),
    )(x_in, w1s, w2c, biases)

    # Flat pixel p = i*W + j with i < Hc, j < Wc is the cropped output at
    # (i, j); remaining rows/cols are valid-conv "garbage" and never read.
    out_flat = out_flat[:N]
    return out_flat.reshape(N, Cout, H, W)[:, :, :Hc, :Wc]


def _reference_forward(x, params, eps=1e-5):
    """Pure-JAX f32 reference (inference-mode BN) for the correctness check."""
    def conv(h, w):
        return lax.conv_general_dilated(
            h, w, window_strides=(1, 1), padding='SAME',
            dimension_numbers=('NCHW', 'OIHW', 'NCHW'))

    def bn(h, prefix):
        s = params[prefix + '_gamma'] / jnp.sqrt(params[prefix + '_var'] + eps)
        b = params[prefix + '_beta'] - params[prefix + '_mean'] * s
        return h * s[None, :, None, None] + b[None, :, None, None]

    left = conv(x, params['conv1_w'])
    left = jnp.maximum(bn(left, 'bn1'), 0.0)
    left = conv(left, params['conv2_w'])
    left = bn(left, 'bn2')
    sc = bn(conv(x, params['convsc_w']), 'bnsc')
    out = jnp.maximum(left + sc, 0.0)
    return out[:, :, 2:-2, 2:-2]


def _init_params(key, inchannel, outchannel):
    ks = jax.random.split(key, 6)

    def bn_params(k, c, prefix):
        k0, k1, k2, k3 = jax.random.split(k, 4)
        return {
            prefix + '_gamma': jax.random.uniform(k0, (c,), jnp.float32, 0.5, 1.5),
            prefix + '_beta': jax.random.normal(k1, (c,), jnp.float32) * 0.1,
            prefix + '_mean': jax.random.normal(k2, (c,), jnp.float32) * 0.1,
            prefix + '_var': jax.random.uniform(k3, (c,), jnp.float32, 0.5, 1.5),
        }

    params = {
        'conv1_w': jax.random.normal(ks[0], (outchannel, inchannel, 3, 3),
                                     jnp.float32) * 0.1,
        'conv2_w': jax.random.normal(ks[1], (outchannel, outchannel, 3, 3),
                                     jnp.float32) * 0.1,
        'convsc_w': jax.random.normal(ks[2], (outchannel, inchannel, 1, 1),
                                      jnp.float32) * 0.1,
    }
    params.update(bn_params(ks[3], outchannel, 'bn1'))
    params.update(bn_params(ks[4], outchannel, 'bn2'))
    params.update(bn_params(ks[5], outchannel, 'bnsc'))
    return params


if __name__ == "__main__":
    # ResidualBlockCrop(inchannel=4, outchannel=32, stride=1, kernel_size=3)
    inchannel, outchannel = 4, 32
    N, H, W = 2, 16, 16

    key = jax.random.PRNGKey(0)
    kx, kp = jax.random.split(key)
    x = jax.random.normal(kx, (N, inchannel, H, W), jnp.float32)
    params = _init_params(kp, inchannel, outchannel)

    fwd = jax.jit(residual_block_crop_forward)
    out = jax.block_until_ready(fwd(x, params))

    ref = _reference_forward(x, params)
    assert out.shape == (N, outchannel, H - 4, W - 4), out.shape
    # bf16 MXU operands (f32 accumulation, BN scales folded in f32 before the
    # bf16 cast) give ~0.3-0.5% relative error vs. the f32 reference.
    max_err = float(jnp.max(jnp.abs(out - ref)))
    assert jnp.allclose(out, ref, rtol=2e-2, atol=2e-2), max_err

    print("KERNEL_OK")
</pallas_src>

<mosaic_0001>
module attributes {stable_mosaic.version = 11 : i64} {
  func.func @_res_block_crop_kernel(%arg0: i32, %arg1: memref<1x4x512xbf16, #tpu.memory_space<vmem>>, %arg2: memref<32x36xbf16, #tpu.memory_space<vmem>>, %arg3: memref<32x292xbf16, #tpu.memory_space<vmem>>, %arg4: memref<32x2xf32, #tpu.memory_space<vmem>>, %arg5: memref<1x32x256xf32, #tpu.memory_space<vmem>>, %arg6: memref<36x384xbf16, #tpu.memory_space<vmem>>, %arg7: memref<292x256xbf16, #tpu.memory_space<vmem>>) attributes {dimension_semantics = [#tpu.dimension_semantics<parallel>], iteration_bounds = array<i64: 2>, scalar_prefetch = 0 : i64, scratch_operands = 2 : i64, tpu.core_type = #tpu.core_type<tc>, window_params = [{transform_indices = @transform_0, window_bounds = array<i64: 1, 4, 512>}, {pipeline_mode = #tpu.pipeline_mode<synchronous>, transform_indices = @transform_1, window_bounds = array<i64: 32, 36>}, {pipeline_mode = #tpu.pipeline_mode<synchronous>, transform_indices = @transform_2, window_bounds = array<i64: 32, 292>}, {pipeline_mode = #tpu.pipeline_mode<synchronous>, transform_indices = @transform_3, window_bounds = array<i64: 32, 2>}, {transform_indices = @transform_4, window_bounds = array<i64: 1, 32, 256>}]} {
    %c0 = arith.constant 0 : index
    %c0_0 = arith.constant 0 : index
    %c0_1 = arith.constant 0 : index
    %0 = vector.load %arg1[%c0, %c0_0, %c0_1] : memref<1x4x512xbf16, #tpu.memory_space<vmem>>, vector<1x4x512xbf16>
    %1 = vector.shape_cast %0 : vector<1x4x512xbf16> to vector<4x512xbf16>
    %2 = vector.extract_strided_slice %1 {offsets = [0, 0], sizes = [4, 384], strides = [1, 1]} : vector<4x512xbf16> to vector<4x384xbf16>
    %c0_2 = arith.constant 0 : index
    %c0_3 = arith.constant 0 : index
    %3 = vector.load %arg6[%c0_2, %c0_3] : memref<36x384xbf16, #tpu.memory_space<vmem>>, vector<4x384xbf16>
    tpu.vector_store %arg6[%c0_2, %c0_3], %2 {strides = array<i32>} : memref<36x384xbf16, #tpu.memory_space<vmem>>, vector<4x384xbf16>,
    %4 = vector.extract_strided_slice %1 {offsets = [0, 1], sizes = [4, 384], strides = [1, 1]} : vector<4x512xbf16> to vector<4x384xbf16>
    %c4 = arith.constant 4 : index
    %c0_4 = arith.constant 0 : index
    %5 = vector.load %arg6[%c4, %c0_4] : memref<36x384xbf16, #tpu.memory_space<vmem>>, vector<4x384xbf16>
    tpu.vector_store %arg6[%c4, %c0_4], %4 {strides = array<i32>} : memref<36x384xbf16, #tpu.memory_space<vmem>>, vector<4x384xbf16>,
    %6 = vector.extract_strided_slice %1 {offsets = [0, 2], sizes = [4, 384], strides = [1, 1]} : vector<4x512xbf16> to vector<4x384xbf16>
    %c8 = arith.constant 8 : index
    %c0_5 = arith.constant 0 : index
    %7 = vector.load %arg6[%c8, %c0_5] : memref<36x384xbf16, #tpu.memory_space<vmem>>, vector<4x384xbf16>
    tpu.vector_store %arg6[%c8, %c0_5], %6 {strides = array<i32>} : memref<36x384xbf16, #tpu.memory_space<vmem>>, vector<4x384xbf16>,
    %8 = vector.extract_strided_slice %1 {offsets = [0, 16], sizes = [4, 384], strides = [1, 1]} : vector<4x512xbf16> to vector<4x384xbf16>
    %c12 = arith.constant 12 : index
    %c0_6 = arith.constant 0 : index
    %9 = vector.load %arg6[%c12, %c0_6] : memref<36x384xbf16, #tpu.memory_space<vmem>>, vector<4x384xbf16>
    tpu.vector_store %arg6[%c12, %c0_6], %8 {strides = array<i32>} : memref<36x384xbf16, #tpu.memory_space<vmem>>, vector<4x384xbf16>,
    %10 = vector.extract_strided_slice %1 {offsets = [0, 17], sizes = [4, 384], strides = [1, 1]} : vector<4x512xbf16> to vector<4x384xbf16>
    %c16 = arith.constant 16 : index
    %c0_7 = arith.constant 0 : index
    %11 = vector.load %arg6[%c16, %c0_7] : memref<36x384xbf16, #tpu.memory_space<vmem>>, vector<4x384xbf16>
    tpu.vector_store %arg6[%c16, %c0_7], %10 {strides = array<i32>} : memref<36x384xbf16, #tpu.memory_space<vmem>>, vector<4x384xbf16>,
    %12 = vector.extract_strided_slice %1 {offsets = [0, 18], sizes = [4, 384], strides = [1, 1]} : vector<4x512xbf16> to vector<4x384xbf16>
    %c20 = arith.constant 20 : index
    %c0_8 = arith.constant 0 : index
    %13 = vector.load %arg6[%c20, %c0_8] : memref<36x384xbf16, #tpu.memory_space<vmem>>, vector<4x384xbf16>
    tpu.vector_store %arg6[%c20, %c0_8], %12 {strides = array<i32>} : memref<36x384xbf16, #tpu.memory_space<vmem>>, vector<4x384xbf16>,
    %14 = vector.extract_strided_slice %1 {offsets = [0, 32], sizes = [4, 384], strides = [1, 1]} : vector<4x512xbf16> to vector<4x384xbf16>
    %c24 = arith.constant 24 : index
    %c0_9 = arith.constant 0 : index
    %15 = vector.load %arg6[%c24, %c0_9] : memref<36x384xbf16, #tpu.memory_space<vmem>>, vector<4x384xbf16>
    tpu.vector_store %arg6[%c24, %c0_9], %14 {strides = array<i32>} : memref<36x384xbf16, #tpu.memory_space<vmem>>, vector<4x384xbf16>,
    %16 = vector.extract_strided_slice %1 {offsets = [0, 33], sizes = [4, 384], strides = [1, 1]} : vector<4x512xbf16> to vector<4x384xbf16>
    %c28 = arith.constant 28 : index
    %c0_10 = arith.constant 0 : index
    %17 = vector.load %arg6[%c28, %c0_10] : memref<36x384xbf16, #tpu.memory_space<vmem>>, vector<4x384xbf16>
    tpu.vector_store %arg6[%c28, %c0_10], %16 {strides = array<i32>} : memref<36x384xbf16, #tpu.memory_space<vmem>>, vector<4x384xbf16>,
    %18 = vector.extract_strided_slice %1 {offsets = [0, 34], sizes = [4, 384], strides = [1, 1]} : vector<4x512xbf16> to vector<4x384xbf16>
    %c32 = arith.constant 32 : index
    %c0_11 = arith.constant 0 : index
    %19 = vector.load %arg6[%c32, %c0_11] : memref<36x384xbf16, #tpu.memory_space<vmem>>, vector<4x384xbf16>
    tpu.vector_store %arg6[%c32, %c0_11], %18 {strides = array<i32>} : memref<36x384xbf16, #tpu.memory_space<vmem>>, vector<4x384xbf16>,
    %20 = vector.extract_strided_slice %1 {offsets = [0, 34], sizes = [4, 256], strides = [1, 1]} : vector<4x512xbf16> to vector<4x256xbf16>
    %c288 = arith.constant 288 : index
    %c0_12 = arith.constant 0 : index
    %21 = vector.load %arg7[%c288, %c0_12] : memref<292x256xbf16, #tpu.memory_space<vmem>>, vector<4x256xbf16>
    tpu.vector_store %arg7[%c288, %c0_12], %20 {strides = array<i32>} : memref<292x256xbf16, #tpu.memory_space<vmem>>, vector<4x256xbf16>,
    %c0_13 = arith.constant 0 : index
    %c0_14 = arith.constant 0 : index
    %22 = vector.load %arg2[%c0_13, %c0_14] : memref<32x36xbf16, #tpu.memory_space<vmem>>, vector<32x36xbf16>
    %c0_15 = arith.constant 0 : index
    %c0_16 = arith.constant 0 : index
    %23 = vector.load %arg6[%c0_15, %c0_16] : memref<36x384xbf16, #tpu.memory_space<vmem>>, vector<36x384xbf16>
    %cst = arith.constant dense<0.000000e+00> : vector<32x384xf32>
    %24 = tpu.matmul %22, %23, %cst {dimension_numbers = #tpu.dot_dimension_numbers<[1], [0], [0], [1], [0, 0, 1, 1], [], []>} : vector<32x36xbf16>, vector<36x384xbf16>, vector<32x384xf32> -> vector<32x384xf32>
    %c0_17 = arith.constant 0 : index
    %c0_18 = arith.constant 0 : index
    %25 = vector.load %arg4[%c0_17, %c0_18] : memref<32x2xf32, #tpu.memory_space<vmem>>, vector<32x1xf32>
    %26 = vector.broadcast %25 : vector<32x1xf32> to vector<32x384xf32>
    %27 = arith.addf %24, %26 : vector<32x384xf32>
    %cst_19 = arith.constant 0.000000e+00 : f32
    %28 = vector.broadcast %cst_19 : f32 to vector<32x384xf32>
    %29 = arith.maximumf %27, %28 : vector<32x384xf32>
    %30 = arith.truncf %29 : vector<32x384xf32> to vector<32x384xbf16>
    %31 = vector.extract_strided_slice %30 {offsets = [0, 0], sizes = [32, 256], strides = [1, 1]} : vector<32x384xbf16> to vector<32x256xbf16>
    %c0_20 = arith.constant 0 : index
    %c0_21 = arith.constant 0 : index
    %32 = vector.load %arg7[%c0_20, %c0_21] : memref<292x256xbf16, #tpu.memory_space<vmem>>, vector<32x256xbf16>
    tpu.vector_store %arg7[%c0_20, %c0_21], %31 {strides = array<i32>} : memref<292x256xbf16, #tpu.memory_space<vmem>>, vector<32x256xbf16>,
    %33 = vector.extract_strided_slice %30 {offsets = [0, 1], sizes = [32, 256], strides = [1, 1]} : vector<32x384xbf16> to vector<32x256xbf16>
    %c32_22 = arith.constant 32 : index
    %c0_23 = arith.constant 0 : index
    %34 = vector.load %arg7[%c32_22, %c0_23] : memref<292x256xbf16, #tpu.memory_space<vmem>>, vector<32x256xbf16>
    tpu.vector_store %arg7[%c32_22, %c0_23], %33 {strides = array<i32>} : memref<292x256xbf16, #tpu.memory_space<vmem>>, vector<32x256xbf16>,
    %35 = vector.extract_strided_slice %30 {offsets = [0, 2], sizes = [32, 256], strides = [1, 1]} : vector<32x384xbf16> to vector<32x256xbf16>
    %c64 = arith.constant 64 : index
    %c0_24 = arith.constant 0 : index
    %36 = vector.load %arg7[%c64, %c0_24] : memref<292x256xbf16, #tpu.memory_space<vmem>>, vector<32x256xbf16>
    tpu.vector_store %arg7[%c64, %c0_24], %35 {strides = array<i32>} : memref<292x256xbf16, #tpu.memory_space<vmem>>, vector<32x256xbf16>,
    %37 = vector.extract_strided_slice %30 {offsets = [0, 16], sizes = [32, 256], strides = [1, 1]} : vector<32x384xbf16> to vector<32x256xbf16>
    %c96 = arith.constant 96 : index
    %c0_25 = arith.constant 0 : index
    %38 = vector.load %arg7[%c96, %c0_25] : memref<292x256xbf16, #tpu.memory_space<vmem>>, vector<32x256xbf16>
    tpu.vector_store %arg7[%c96, %c0_25], %37 {strides = array<i32>} : memref<292x256xbf16, #tpu.memory_space<vmem>>, vector<32x256xbf16>,
    %39 = vector.extract_strided_slice %30 {offsets = [0, 17], sizes = [32, 256], strides = [1, 1]} : vector<32x384xbf16> to vector<32x256xbf16>
    %c128 = arith.constant 128 : index
    %c0_26 = arith.constant 0 : index
    %40 = vector.load %arg7[%c128, %c0_26] : memref<292x256xbf16, #tpu.memory_space<vmem>>, vector<32x256xbf16>
    tpu.vector_store %arg7[%c128, %c0_26], %39 {strides = array<i32>} : memref<292x256xbf16, #tpu.memory_space<vmem>>, vector<32x256xbf16>,
    %41 = vector.extract_strided_slice %30 {offsets = [0, 18], sizes = [32, 256], strides = [1, 1]} : vector<32x384xbf16> to vector<32x256xbf16>
    %c160 = arith.constant 160 : index
    %c0_27 = arith.constant 0 : index
    %42 = vector.load %arg7[%c160, %c0_27] : memref<292x256xbf16, #tpu.memory_space<vmem>>, vector<32x256xbf16>
    tpu.vector_store %arg7[%c160, %c0_27], %41 {strides = array<i32>} : memref<292x256xbf16, #tpu.memory_space<vmem>>, vector<32x256xbf16>,
    %43 = vector.extract_strided_slice %30 {offsets = [0, 32], sizes = [32, 256], strides = [1, 1]} : vector<32x384xbf16> to vector<32x256xbf16>
    %c192 = arith.constant 192 : index
    %c0_28 = arith.constant 0 : index
    %44 = vector.load %arg7[%c192, %c0_28] : memref<292x256xbf16, #tpu.memory_space<vmem>>, vector<32x256xbf16>
    tpu.vector_store %arg7[%c192, %c0_28], %43 {strides = array<i32>} : memref<292x256xbf16, #tpu.memory_space<vmem>>, vector<32x256xbf16>,
    %45 = vector.extract_strided_slice %30 {offsets = [0, 33], sizes = [32, 256], strides = [1, 1]} : vector<32x384xbf16> to vector<32x256xbf16>
    %c224 = arith.constant 224 : index
    %c0_29 = arith.constant 0 : index
    %46 = vector.load %arg7[%c224, %c0_29] : memref<292x256xbf16, #tpu.memory_space<vmem>>, vector<32x256xbf16>
    tpu.vector_store %arg7[%c224, %c0_29], %45 {strides = array<i32>} : memref<292x256xbf16, #tpu.memory_space<vmem>>, vector<32x256xbf16>,
    %47 = vector.extract_strided_slice %30 {offsets = [0, 34], sizes = [32, 256], strides = [1, 1]} : vector<32x384xbf16> to vector<32x256xbf16>
    %c256 = arith.constant 256 : index
    %c0_30 = arith.constant 0 : index
    %48 = vector.load %arg7[%c256, %c0_30] : memref<292x256xbf16, #tpu.memory_space<vmem>>, vector<32x256xbf16>
    tpu.vector_store %arg7[%c256, %c0_30], %47 {strides = array<i32>} : memref<292x256xbf16, #tpu.memory_space<vmem>>, vector<32x256xbf16>,
    %c0_31 = arith.constant 0 : index
    %c0_32 = arith.constant 0 : index
    %49 = vector.load %arg3[%c0_31, %c0_32] : memref<32x292xbf16, #tpu.memory_space<vmem>>, vector<32x292xbf16>
    %c0_33 = arith.constant 0 : index
    %c0_34 = arith.constant 0 : index
    %50 = vector.load %arg7[%c0_33, %c0_34] : memref<292x256xbf16, #tpu.memory_space<vmem>>, vector<292x256xbf16>
    %cst_35 = arith.constant dense<0.000000e+00> : vector<32x256xf32>
    %51 = tpu.matmul %49, %50, %cst_35 {dimension_numbers = #tpu.dot_dimension_numbers<[1], [0], [0], [1], [0, 0, 1, 1], [], []>} : vector<32x292xbf16>, vector<292x256xbf16>, vector<32x256xf32> -> vector<32x256xf32>
    %c0_36 = arith.constant 0 : index
    %c1 = arith.constant 1 : index
    %52 = vector.load %arg4[%c0_36, %c1] : memref<32x2xf32, #tpu.memory_space<vmem>>, vector<32x1xf32>
    %53 = vector.broadcast %52 : vector<32x1xf32> to vector<32x256xf32>
    %54 = arith.addf %51, %53 : vector<32x256xf32>
    %cst_37 = arith.constant 0.000000e+00 : f32
    %55 = vector.broadcast %cst_37 : f32 to vector<32x256xf32>
    %56 = arith.maximumf %54, %55 : vector<32x256xf32>
    %c0_38 = arith.constant 0 : index
    %c0_39 = arith.constant 0 : index
    %c0_40 = arith.constant 0 : index
    %57 = vector.load %arg5[%c0_38, %c0_39, %c0_40] : memref<1x32x256xf32, #tpu.memory_space<vmem>>, vector<1x32x256xf32>
    %58 = vector.shape_cast %57 : vector<1x32x256xf32> to vector<32x256xf32>
    %59 = vector.shape_cast %56 : vector<32x256xf32> to vector<1x32x256xf32>
    tpu.vector_store %arg5[%c0_38, %c0_39, %c0_40], %59 {strides = array<i32>} : memref<1x32x256xf32, #tpu.memory_space<vmem>>, vector<1x32x256xf32>,
    return
  }
  func.func @transform_0(%arg0: i32) -> (i32, i32, i32) {
    %c0_i32 = arith.constant 0 : i32
    %c0_i32_0 = arith.constant 0 : i32
    %c0_i32_1 = arith.constant 0 : i32
    return %arg0, %c0_i32, %c0_i32_0 : i32, i32, i32
  }
  func.func @transform_1(%arg0: i32) -> (i32, i32) {
    %c0_i32 = arith.constant 0 : i32
    %c0_i32_0 = arith.constant 0 : i32
    %c0_i32_1 = arith.constant 0 : i32
    return %c0_i32, %c0_i32_0 : i32, i32
  }
  func.func @transform_2(%arg0: i32) -> (i32, i32) {
    %c0_i32 = arith.constant 0 : i32
    %c0_i32_0 = arith.constant 0 : i32
    %c0_i32_1 = arith.constant 0 : i32
    return %c0_i32, %c0_i32_0 : i32, i32
  }
  func.func @transform_3(%arg0: i32) -> (i32, i32) {
    %c0_i32 = arith.constant 0 : i32
    %c0_i32_0 = arith.constant 0 : i32
    %c0_i32_1 = arith.constant 0 : i32
    return %c0_i32, %c0_i32_0 : i32, i32
  }
  func.func @transform_4(%arg0: i32) -> (i32, i32, i32) {
    %c0_i32 = arith.constant 0 : i32
    %c0_i32_0 = arith.constant 0 : i32
    %c0_i32_1 = arith.constant 0 : i32
    return %arg0, %c0_i32, %c0_i32_0 : i32, i32, i32
  }
}

</mosaic_0001>

<llo_original>
// kernel: residual_block_crop_forward.1
$region0: #{residual_block_crop_forward.1}
  #allocation0 [shape = 'u32[]', space=smem, size = 0x4, offset = 0x4, fixed_abs, tag = 'smem constant byte address 0x4 - core index']
  #allocation1 [shape = 'u32[144,128]{1,0:T(1,128)}', space=vmem, size = 0x12000, scoped, tag = 'internal scratch']
  #allocation2 [shape = 'bf16[36,384]{1,0:T(8,128)(2,1)}', space=vmem, size = 0x7800, scoped, tag = 'scratch operand']
  #allocation3 [shape = 'bf16[292,256]{1,0:T(8,128)(2,1)}', space=vmem, size = 0x25000, scoped, tag = 'scratch operand']
  %s0 = inlined_call_operand.vmem [shape: bf16[2,4,512], index: 0, kind: input, shape index: {}]
  %s1 = inlined_call_operand.vmem [shape: bf16[32,36], index: 1, kind: input, shape index: {}]
  %s2 = inlined_call_operand.vmem [shape: bf16[32,292], index: 2, kind: input, shape index: {}]
  %s3 = inlined_call_operand.vmem [shape: f32[32,2], index: 3, kind: input, shape index: {}]
  %s4 = inlined_call_operand.vmem [shape: f32[2,32,256], index: 4, kind: output, shape index: {}]
  %s5 = sld [smem:[#allocation0]]
  $region49: #{residual_block_crop_forward.1} parent=0
    _
  %s7 = ssub.s32 1, %s5
  %s8 = scalar_select 0, %s7, %s5
  loop: start=0, step=1, limit=4
  $region2: #{residual_block_crop_forward.1} parent=0 // loop_pre_header
    _
  $region3: #{residual_block_crop_forward.1} parent=0 // loop_header
    %s10 = sphi 0, %s14
    %p11 = scmp.ge.s32.totalorder %s10, 4
    %s20 = sphi 0, %s22
    %s23 = sphi 0, %s20
    %s24 = sphi 0, %s23
    %s40 = sphi 0, %s24
    %s44 = sphi 0, %s44
    %s46 = sphi 0, %s44
    %s47 = sphi 0, %s46
    %s61 = sphi 0, %s47
    %s65 = sphi 0, %s65
    %s67 = sphi 0, %s65
    %s68 = sphi 0, %s67
    %s82 = sphi 0, %s68
    %s86 = sphi 0, %s86
    %s88 = sphi 0, %s86
    %s89 = sphi 0, %s88
    %s103 = sphi 0, %s89
    %s109 = sphi 0, %s111
    %s112 = sphi 0, %s109
    %s113 = sphi 0, %s112
    %s129 = sphi 0, %s113
  $region4: #{residual_block_crop_forward.1} parent=0 // loop_header_branch
    %13 = sbr.rel (%p11) target = $region8
  $region5: #{residual_block_crop_forward.1} parent=0 // loop_body
    %s15 = ssub.s32 %s10, 1
    %s16 = ssub.s32 %s10, 2
    %s17 = sadd.s32 %s10, 1
    %s18 = ssub.s32 %s10, %s17
    %p19 = scmp.eq.s32.totalorder %s18, 0
    %s21 = sadd.s32 %s20, 1
    %s22 = scalar_select %p19, %s20, %s21
    %p25 = pneg %p19
    %p26 = scmp.eq.s32.totalorder %s10, 1
    %p27 = por %p25, %p26
    %p28 = scmp.ne.s32.totalorder %s20, %s23
    %p29 = scmp.eq.s32.totalorder %s10, 0
    %p30 = por %p28, %p29
    %p31 = scmp.ne.s32.totalorder %s20, %s23
    %p32 = scmp.eq.s32.totalorder %s15, 1
    %p33 = por %p31, %p32
    %p34 = scmp.ne.s32.totalorder %s23, %s24
    %p35 = scmp.eq.s32.totalorder %s15, 0
    %p36 = por %p34, %p35
    %p37 = scmp.ne.s32.totalorder %s23, %s24
    %p38 = scmp.eq.s32.totalorder %s16, 1
    %p39 = por %p37, %p38
    %p41 = scmp.ne.s32.totalorder %s24, %s40
    %p42 = scmp.eq.s32.totalorder %s16, 0
    %p43 = por %p41, %p42
    %s45 = sadd.s32 %s44, 1
    %p48 = scmp.eq.s32.totalorder %s10, 1
    %p49 = scmp.ne.s32.totalorder %s44, %s46
    %p50 = scmp.eq.s32.totalorder %s10, 0
    %p51 = por %p49, %p50
    %p52 = scmp.ne.s32.totalorder %s44, %s46
    %p53 = scmp.eq.s32.totalorder %s15, 1
    %p54 = por %p52, %p53
    %p55 = scmp.ne.s32.totalorder %s46, %s47
    %p56 = scmp.eq.s32.totalorder %s15, 0
    %p57 = por %p55, %p56
    %p58 = scmp.ne.s32.totalorder %s46, %s47
    %p59 = scmp.eq.s32.totalorder %s16, 1
    %p60 = por %p58, %p59
    %p62 = scmp.ne.s32.totalorder %s47, %s61
    %p63 = scmp.eq.s32.totalorder %s16, 0
    %p64 = por %p62, %p63
    %s66 = sadd.s32 %s65, 1
    %p69 = scmp.eq.s32.totalorder %s10, 1
    %p70 = scmp.ne.s32.totalorder %s65, %s67
    %p71 = scmp.eq.s32.totalorder %s10, 0
    %p72 = por %p70, %p71
    %p73 = scmp.ne.s32.totalorder %s65, %s67
    %p74 = scmp.eq.s32.totalorder %s15, 1
    %p75 = por %p73, %p74
    %p76 = scmp.ne.s32.totalorder %s67, %s68
    %p77 = scmp.eq.s32.totalorder %s15, 0
    %p78 = por %p76, %p77
    %p79 = scmp.ne.s32.totalorder %s67, %s68
    %p80 = scmp.eq.s32.totalorder %s16, 1
    %p81 = por %p79, %p80
    %p83 = scmp.ne.s32.totalorder %s68, %s82
    %p84 = scmp.eq.s32.totalorder %s16, 0
    %p85 = por %p83, %p84
    %s87 = sadd.s32 %s86, 1
    %p90 = scmp.eq.s32.totalorder %s10, 1
    %p91 = scmp.ne.s32.totalorder %s86, %s88
    %p92 = scmp.eq.s32.totalorder %s10, 0
    %p93 = por %p91, %p92
    %p94 = scmp.ne.s32.totalorder %s86, %s88
    %p95 = scmp.eq.s32.totalorder %s15, 1
    %p96 = por %p94, %p95
    %p97 = scmp.ne.s32.totalorder %s88, %s89
    %p98 = scmp.eq.s32.totalorder %s15, 0
    %p99 = por %p97, %p98
    %p100 = scmp.ne.s32.totalorder %s88, %s89
    %p101 = scmp.eq.s32.totalorder %s16, 1
    %p102 = por %p100, %p101
    %p104 = scmp.ne.s32.totalorder %s89, %s103
    %p105 = scmp.eq.s32.totalorder %s16, 0
    %p106 = por %p104, %p105
    %s107 = ssub.s32 %s10, %s17
    %p108 = scmp.eq.s32.totalorder %s107, 0
    %s110 = sadd.s32 %s109, 1
    %s111 = scalar_select %p108, %s109, %s110
    %p114 = pneg %p108
    %p115 = scmp.eq.s32.totalorder %s10, 1
    %p116 = por %p114, %p115
    %p117 = scmp.ne.s32.totalorder %s109, %s112
    %p118 = scmp.eq.s32.totalorder %s10, 0
    %p119 = por %p117, %p118
    %p120 = scmp.ne.s32.totalorder %s109, %s112
    %p121 = scmp.eq.s32.totalorder %s15, 1
    %p122 = por %p120, %p121
    %p123 = scmp.ne.s32.totalorder %s112, %s113
    %p124 = scmp.eq.s32.totalorder %s15, 0
    %p125 = por %p123, %p124
    %p126 = scmp.ne.s32.totalorder %s112, %s113
    %p127 = scmp.eq.s32.totalorder %s16, 1
    %p128 = por %p126, %p127
    %p130 = scmp.ne.s32.totalorder %s113, %s129
    %p131 = scmp.eq.s32.totalorder %s16, 0
    %p132 = por %p130, %p131
    %p133 = scmp.le.s32.totalorder 1, %s10
    %p134 = scmp.lt.s32.totalorder %s10, 3
    %p135 = pnand %p133, %p134
    %p136 = pneg %p135
    // Predicated region
    $region9: #{residual_block_crop_forward.1} parent=5 // pred_check
      _
    $region10: #{residual_block_crop_forward.1} parent=5 // pred_check_branch
      %138 = sbr.rel (%p135) target = $region12
    $region11: #{residual_block_crop_forward.1} parent=5 // pred_region
      %s139 = ssub.s32 %s10, 1
      // Predicated region
      $region13: #{residual_block_crop_forward.1} parent=11 // pred_check
        %p140 = pneg %p57
      $region14: #{residual_block_crop_forward.1} parent=11 // pred_check_branch
        %142 = sbr.rel (%p140) target = $region16
      $region15: #{residual_block_crop_forward.1} parent=11 // pred_region
        _
      $region16: #{residual_block_crop_forward.1} parent=11 // pred_fallthru
        _
      // Predicated region
      $region17: #{residual_block_crop_forward.1} parent=11 // pred_check
        %p143 = pneg %p78
      $region18: #{residual_block_crop_forward.1} parent=11 // pred_check_branch
        %145 = sbr.rel (%p143) target = $region20
      $region19: #{residual_block_crop_forward.1} parent=11 // pred_region
        _
      $region20: #{residual_block_crop_forward.1} parent=11 // pred_fallthru
        _
      // Predicated region
      $region21: #{residual_block_crop_forward.1} parent=11 // pred_check
        %p146 = pneg %p99
      $region22: #{residual_block_crop_forward.1} parent=11 // pred_check_branch
        %148 = sbr.rel (%p146) target = $region24
      $region23: #{residual_block_crop_forward.1} parent=11 // pred_region
        _
      $region24: #{residual_block_crop_forward.1} parent=11 // pred_fallthru
        _
    $region12: #{residual_block_crop_forward.1} parent=5 // pred_fallthru
      _
    %p149 = scmp.lt.s32.totalorder %s10, 2
    // Predicated region
    $region25: #{residual_block_crop_forward.1} parent=5 // pred_check
      %p150 = pneg %p149
    $region26: #{residual_block_crop_forward.1} parent=5 // pred_check_branch
      %152 = sbr.rel (%p150) target = $region28
    $region27: #{residual_block_crop_forward.1} parent=5 // pred_region
      // Predicated region
      $region29: #{residual_block_crop_forward.1} parent=27 // pred_check
        %p153 = pneg %p30
      $region30: #{residual_block_crop_forward.1} parent=27 // pred_check_branch
        %155 = sbr.rel (%p153) target = $region32
      $region31: #{residual_block_crop_forward.1} parent=27 // pred_region
        %p156 = scmp.lt.s32.totalorder %s10, 1
        %s157 = scalar_select %p156, %s10, 1
        %s158 = smul.addr %s157, 4
        %s159 = smul.addr %s158, 2
        %s160 = scalar_lea.vmem %s0, %s159
      $region32: #{residual_block_crop_forward.1} parent=27 // pred_fallthru
        _
    $region28: #{residual_block_crop_forward.1} parent=5 // pred_fallthru
      _
    %p161 = scmp.le.s32.totalorder 1, %s10
    %p162 = scmp.lt.s32.totalorder %s10, 3
    %p163 = pnand %p161, %p162
    %p164 = pneg %p163
    // Predicated region
    $region33: #{residual_block_crop_forward.1} parent=5 // pred_check
      _
    $region34: #{residual_block_crop_forward.1} parent=5 // pred_check_branch
      %166 = sbr.rel (%p163) target = $region36
    $region35: #{residual_block_crop_forward.1} parent=5 // pred_region
      %s167 = ssub.s32 %s10, 1
      %p168 = scmp.lt.s32.totalorder %s15, 1
      %s169 = scalar_select %p168, %s15, 1
      %s170 = smul.addr %s169, 4
      %s171 = smul.addr %s170, 2
      %s172 = scalar_lea.vmem %s0, %s171
      %p173 = pneg %p36
      %p174 = pneg %p33
      %p175 = pneg %p57
      %p176 = pneg %p54
      %p177 = pneg %p78
      %p178 = pneg %p75
      %p179 = pneg %p99
      %p180 = pneg %p96
      %p181 = pneg %p125
      %p182 = pneg %p122
      %p183 = scmp.lt.s32.totalorder %s15, 1
      %s184 = scalar_select %p183, %s15, 1
      %s185 = smul.addr %s184, 8
      %s186 = smul.addr %s185, 8
      %s187 = scalar_lea.vmem %s4, %s186
      %p188 = scmp.lt.s32.totalorder %s15, 1
      %s189 = scalar_select %p188, %s15, 1
      %s190 = smul.addr %s189, 4
      %s191 = smul.addr %s190, 2
      %s192 = scalar_lea.vmem %s0, %s191
      %p193 = scmp.lt.s32.totalorder %s15, 1
      %s194 = scalar_select %p193, %s15, 1
      %s195 = smul.addr %s194, 8
      %s196 = smul.addr %s195, 8
      %s197 = scalar_lea.vmem %s4, %s196
      %v199 = vld [vmem:[%s192] sm:$0xff]
      %v201 = vcombine.high %v199, %v199
      %v203 = vunpack.c.l.s4 1983009808
      %v204 = vunpack.c.0.s8 %v203
      %v205 = vlaneseq
      %v206 = vshrl.u32 %v205, 7
      %v207 = vsub.s32 %v204, %v206
      %v208 = vrot.slane %v199, %v207
      %v210 = vunpack.c.l.s4 1983009808
      %v211 = vunpack.c.0.s8 %v210
      %v212 = vlaneseq
      %v213 = vshrl.u32 %v212, 7
      %v214 = vsub.s32 %v211, %v213
      %v215 = vrot.slane %v201, %v214
      %218 = vst [vmem:[#allocation2] sm:$0x33] %v208
      %219 = vst [vmem:[#allocation2 + $0x8] sm:$0x3] %v215
      %v220 = vcombine.low %v199, %v199
      %v222 = vunpack.c.l.s4 1983009808
      %v223 = vunpack.c.0.s8 %v222
      %v224 = vlaneseq
      %v225 = vshrl.u32 %v224, 7
      %v226 = vsub.s32 %v223, %v225
      %v227 = vrot.slane %v220, %v226
      %228 = vrot.lane.b32.xlu0 %v227, 127
      %v229 = vpop.permute.xlu0 %228
      %230 = vrot.lane.b32.xlu0 %v208, 127
      %v231 = vpop.permute.xlu0 %230
      %v232 = vrot.slane %v229, 4
      %v233 = vrot.slane %v231, 4
      %vm234 = vcmask 1043456
      %v235 = vsel %vm234, %v232, %v233
      %vm236 = vcmask 1039360
      %v237 = vsel %vm236, %v229, %v235
      %v238 = vsel %vm236, %v231, %v233
      %241 = vst [vmem:[#allocation2] sm:$0xcc] %v237
      %242 = vst [vmem:[#allocation2 + $0x8] sm:$0xc] %v238
      %243 = vrot.lane.b32.xlu0 %v208, 126
      %v244 = vpop.permute.xlu0 %243
      %245 = vrot.lane.b32.xlu0 %v215, 126
      %v246 = vpop.permute.xlu0 %245
      %v247 = vrot.slane %v244, 4
      %v248 = vrot.slane %v246, 4
      %v249 = vsel %vm234, %v247, %v248
      %vm250 = vcmask 1031168
      %v251 = vsel %vm250, %v244, %v249
      %v252 = vsel %vm250, %v246, %v248
      %255 = vst [vmem:[#allocation2 + $0xc] sm:$0x33] %v251
      %256 = vst [vmem:[#allocation2 + $0x14] sm:$0x3] %v252
      %257 = vrot.lane.b32.xlu0 %v227, 112
      %v258 = vpop.permute.xlu0 %257
      %259 = vrot.lane.b32.xlu0 %v208, 112
      %v260 = vpop.permute.xlu0 %259
      %v261 = vrot.slane %v258, 4
      %v262 = vrot.slane %v260, 4
      %v263 = vsel %vm234, %v261, %v262
      %vm264 = vcmask 916480
      %v265 = vsel %vm264, %v258, %v263
      %v266 = vsel %vm264, %v260, %v262
      %269 = vst [vmem:[#allocation2 + $0xc] sm:$0xcc] %v265
      %270 = vst [vmem:[#allocation2 + $0x14] sm:$0xc] %v266
      %271 = vrot.lane.b32.xlu0 %v208, 111
      %v272 = vpop.permute.xlu0 %271
      %273 = vrot.lane.b32.xlu0 %v215, 111
      %v274 = vpop.permute.xlu0 %273
      %v275 = vrot.slane %v272, 4
      %v276 = vrot.slane %v274, 4
      %v277 = vsel %vm234, %v275, %v276
      %vm278 = vcmask 908288
      %v279 = vsel %vm278, %v272, %v277
      %v280 = vsel %vm278, %v274, %v276
      %283 = vst [vmem:[#allocation2 + $0x18] sm:$0x33] %v279
      %284 = vst [vmem:[#allocation2 + $0x20] sm:$0x3] %v280
      %285 = vrot.lane.b32.xlu0 %v227, 110
      %v286 = vpop.permute.xlu0 %285
      %287 = vrot.lane.b32.xlu0 %v208, 110
      %v288 = vpop.permute.xlu0 %287
      %v289 = vrot.slane %v286, 4
      %v290 = vrot.slane %v288, 4
      %v291 = vsel %vm234, %v289, %v290
      %vm292 = vcmask 900096
      %v293 = vsel %vm292, %v286, %v291
      %v294 = vsel %vm292, %v288, %v290
      %297 = vst [vmem:[#allocation2 + $0x18] sm:$0xcc] %v293
      %298 = vst [vmem:[#allocation2 + $0x20] sm:$0xc] %v294
      %299 = vrot.lane.b32.xlu0 %v208, 96
      %v300 = vpop.permute.xlu0 %299
      %301 = vrot.lane.b32.xlu0 %v215, 96
      %v302 = vpop.permute.xlu0 %301
      %v303 = vrot.slane %v300, 4
      %v304 = vrot.slane %v302, 4
      %v305 = vsel %vm234, %v303, %v304
      %vm306 = vcmask 785408
      %v307 = vsel %vm306, %v300, %v305
      %v308 = vsel %vm306, %v302, %v304
      %311 = vst [vmem:[#allocation2 + $0x24] sm:$0x33] %v307
      %312 = vst [vmem:[#allocation2 + $0x2c] sm:$0x3] %v308
      %313 = vrot.lane.b32.xlu0 %v227, 95
      %v314 = vpop.permute.xlu0 %313
      %315 = vrot.lane.b32.xlu0 %v208, 95
      %v316 = vpop.permute.xlu0 %315
      %v317 = vrot.slane %v314, 4
      %v318 = vrot.slane %v316, 4
      %v319 = vsel %vm234, %v317, %v318
      %vm320 = vcmask 777216
      %v321 = vsel %vm320, %v314, %v319
      %v322 = vsel %vm320, %v316, %v318
      %325 = vst [vmem:[#allocation2 + $0x24] sm:$0xcc] %v321
      %326 = vst [vmem:[#allocation2 + $0x2c] sm:$0xc] %v322
      %327 = vrot.lane.b32.xlu0 %v208, 94
      %v328 = vpop.permute.xlu0 %327
      %329 = vrot.lane.b32.xlu0 %v215, 94
      %v330 = vpop.permute.xlu0 %329
      %v331 = vrot.slane %v328, 4
      %v332 = vrot.slane %v330, 4
      %v333 = vsel %vm234, %v331, %v332
      %vm334 = vcmask 769024
      %v335 = vsel %vm334, %v328, %v333
      %v336 = vsel %vm334, %v330, %v332
      %339 = vst [vmem:[#allocation2 + $0x30] sm:$0x33] %v335
      %340 = vst [vmem:[#allocation2 + $0x38] sm:$0x3] %v336
      %341 = vst [vmem:[#allocation3 + $0x120] sm:$0x33] %v335
      %v342 = vld [vmem:[%s1] sm:$0xf]
      %v343 = vld [vmem:[%s1 + $0x4] sm:$0xf]
      %v344 = vld [vmem:[%s1 + $0x8] sm:$0xf]
      %v345 = vld [vmem:[%s1 + $0xc] sm:$0xf]
      %v346 = vld [vmem:[#allocation2] sm:$0xff]
      %v347 = vld [vmem:[#allocation2 + $0x8] sm:$0xf]
      %v348 = vld [vmem:[#allocation2 + $0xc] sm:$0xff]
      %v349 = vld [vmem:[#allocation2 + $0x14] sm:$0xf]
      %v350 = vld [vmem:[#allocation2 + $0x18] sm:$0xff]
      %v351 = vld [vmem:[#allocation2 + $0x20] sm:$0xf]
      %v352 = vld [vmem:[#allocation2 + $0x24] sm:$0xff]
      %v353 = vld [vmem:[#allocation2 + $0x2c] sm:$0xf]
      %v354 = vld [vmem:[#allocation2 + $0x30] sm:$0x33]
      %v355 = vld [vmem:[#allocation2 + $0x38] sm:$0x3]
      %v356 = vld [vmem:[%s3] sm:$0xff]
      %v357 = vld [vmem:[%s3 + $0x8] sm:$0xff]
      %v358 = vld [vmem:[%s3 + $0x10] sm:$0xff]
      %v359 = vld [vmem:[%s3 + $0x18] sm:$0xff]
      %361 = vset.pattern.permute.xlu0 0
      %362 = vperm.xlu0 %361, %v356
      %v363 = vpop.permute.xlu0 %362
      %366 = vset.pattern.permute.xlu0 0
      %367 = vperm.xlu0 %366, %v357
      %v368 = vpop.permute.xlu0 %367
      %371 = vset.pattern.permute.xlu0 0
      %372 = vperm.xlu0 %371, %v358
      %v373 = vpop.permute.xlu0 %372
      %376 = vset.pattern.permute.xlu0 0
      %377 = vperm.xlu0 %376, %v359
      %v378 = vpop.permute.xlu0 %377
      %v384 = vunpack.c.l.b16 %v342
      %v385 = vunpack.c.l.b16 %v343
      %v386 = vunpack.c.l.b16 %v344
      %v387 = vunpack.c.l.b16 %v345
      %v388 = vpack.c.b16 %v385, %v384
      %v389 = vpack.c.b16 %v387, %v386
      %v400 = vunpack.c.l.b16 %v346
      %v401 = vunpack.c.h.b16 %v346
      %v402 = vunpack.c.l.b16 %v347
      %v403 = vunpack.c.l.b16 %v348
      %v404 = vunpack.c.h.b16 %v348
      %v405 = vunpack.c.l.b16 %v349
      %v406 = vunpack.c.l.b16 %v350
      %v407 = vunpack.c.h.b16 %v350
      %v408 = vunpack.c.l.b16 %v351
      %v409 = vunpack.c.l.b16 %v352
      %v410 = vunpack.c.h.b16 %v352
      %v411 = vunpack.c.l.b16 %v353
      %v412 = vunpack.c.l.b16 %v354
      %v413 = vunpack.c.h.b16 %v354
      %v414 = vunpack.c.l.b16 %v355
      %v415 = vpack.c.b16 %v403, %v400
      %v416 = vpack.c.b16 %v404, %v401
      %v417 = vpack.c.b16 %v405, %v402
      %v418 = vpack.c.b16 %v409, %v406
      %v419 = vpack.c.b16 %v410, %v407
      %v420 = vpack.c.b16 %v411, %v408
      %v421 = vpack.c.b16 %v412, %v412
      %v422 = vpack.c.b16 %v413, %v413
      %v423 = vpack.c.b16 %v414, %v414
      %vm430 = vcmask 293888
      %v432 = vsel %vm430, %v388, 0
      %v435 = vsel %vm430, %v389, 0
      %vm437 = vcmask 1041408
      %v439 = vsel %vm437, %v421, 0
      %v442 = vsel %vm437, %v422, 0
      %v445 = vsel %vm437, %v423, 0
      %447 = vmatprep.subr.bf16.mxu0 0
      %448 = vmatpush1.bf16.msra.mxu0 0
      %449 = vmatprep.subr.bf16.mxu0 0
      %450 = vmatpush1.bf16.msra.mxu0 0
      %451 = vmatprep.subr.bf16.mxu0 0
      %452 = vmatpush1.bf16.msra.mxu0 0
      %453 = vmatprep.subr.bf16.mxu0 0
      %454 = vmatpush1.bf16.msra.mxu0 0
      %455 = vmatprep.subr.bf16.mxu0 0
      %456 = vmatpush1.bf16.msra.mxu0 0
      %457 = vmatprep.subr.bf16.mxu0 %v442
      %458 = vmatpush1.bf16.msra.mxu0 %v439
      %459 = vmatprep.subr.bf16.mxu0 %v419
      %460 = vmatpush1.bf16.msra.mxu0 %v418
      %461 = vmatprep.subr.bf16.mxu0 %v416
      %462 = vmatpush1.bf16.msra.mxu0 %v415
      %463 = vmatprep.subr.bf16.mxu0 0
      %464 = vmatpush2.bf16.msra.mxu0 0
      %465 = vmatprep.subr.bf16.mxu0 0
      %466 = vmatpush2.bf16.msra.mxu0 0
      %467 = vmatprep.subr.bf16.mxu0 0
      %468 = vmatpush2.bf16.msra.mxu0 0
      %469 = vmatprep.subr.bf16.mxu0 0
      %470 = vmatpush2.bf16.msra.mxu0 0
      %471 = vmatprep.subr.bf16.mxu0 0
      %472 = vmatpush2.bf16.msra.mxu0 0
      %473 = vmatprep.subr.bf16.mxu0 0
      %474 = vmatpush2.bf16.msra.mxu0 0
      %475 = vmatprep.subr.bf16.mxu0 0
      %476 = vmatpush2.bf16.msra.mxu0 0
      %477 = vmatprep.subr.bf16.mxu0 0
      %478 = vmatpush2.bf16.msra.mxu0 0
      %479 = vmatprep.mubr.bf16.mxu0 0
      %480 = vmatmul.mubr.bf16.gmra.mxu0 %v432
      %v481 = vpop.f32.mrf.mxu0
      %v482 = vadd.f32 %v363, %v481
      %v483 = vpop.f32.mrf.mxu0
      %v484 = vadd.f32 %v363, %v483
      %v485 = vpop.f32.mrf.mxu0
      %v486 = vadd.f32 %v368, %v485
      %v487 = vpop.f32.mrf.mxu0
      %v488 = vadd.f32 %v368, %v487
      %489 = vmatprep.mubr.bf16.mxu0 0
      %490 = vmatmul.mubr.bf16.gmra.mxu0 %v435
      %v491 = vpop.f32.mrf.mxu0
      %v492 = vadd.f32 %v373, %v491
      %v493 = vpop.f32.mrf.mxu0
      %v494 = vadd.f32 %v373, %v493
      %v495 = vpop.f32.mrf.mxu0
      %v496 = vadd.f32 %v378, %v495
      %v497 = vpop.f32.mrf.mxu0
      %v498 = vadd.f32 %v378, %v497
      %499 = vdwg.mxu0
      %500 = vmatprep.subr.bf16.mxu0 0
      %501 = vmatpush1.bf16.msra.mxu0 0
      %502 = vmatprep.subr.bf16.mxu0 0
      %503 = vmatpush1.bf16.msra.mxu0 0
      %504 = vmatprep.subr.bf16.mxu0 0
      %505 = vmatpush1.bf16.msra.mxu0 0
      %506 = vmatprep.subr.bf16.mxu0 0
      %507 = vmatpush1.bf16.msra.mxu0 0
      %508 = vmatprep.subr.bf16.mxu0 0
      %509 = vmatpush1.bf16.msra.mxu0 0
      %510 = vmatprep.subr.bf16.mxu0 0
      %511 = vmatpush1.bf16.msra.mxu0 %v445
      %512 = vmatprep.subr.bf16.mxu0 0
      %513 = vmatpush1.bf16.msra.mxu0 %v420
      %514 = vmatprep.subr.bf16.mxu0 0
      %515 = vmatpush1.bf16.msra.mxu0 %v417
      %516 = vmatprep.subr.bf16.mxu0 0
      %517 = vmatpush2.bf16.msra.mxu0 0
      %518 = vmatprep.subr.bf16.mxu0 0
      %519 = vmatpush2.bf16.msra.mxu0 0
      %520 = vmatprep.subr.bf16.mxu0 0
      %521 = vmatpush2.bf16.msra.mxu0 0
      %522 = vmatprep.subr.bf16.mxu0 0
      %523 = vmatpush2.bf16.msra.mxu0 0
      %524 = vmatprep.subr.bf16.mxu0 0
      %525 = vmatpush2.bf16.msra.mxu0 0
      %526 = vmatprep.subr.bf16.mxu0 0
      %527 = vmatpush2.bf16.msra.mxu0 0
      %528 = vmatprep.subr.bf16.mxu0 0
      %529 = vmatpush2.bf16.msra.mxu0 0
      %530 = vmatprep.subr.bf16.mxu0 0
      %531 = vmatpush2.bf16.msra.mxu0 0
      %532 = vmatprep.mubr.bf16.mxu0 0
      %533 = vmatmul.mubr.bf16.gmra.mxu0 %v432
      %v534 = vpop.f32.mrf.mxu0
      %v535 = vadd.f32 %v363, %v534
      %v536 = vpop.f32.mrf.mxu0
      %v537 = vpop.f32.mrf.mxu0
      %v538 = vadd.f32 %v368, %v537
      %v539 = vpop.f32.mrf.mxu0
      %540 = vmatprep.mubr.bf16.mxu0 0
      %541 = vmatmul.mubr.bf16.gmra.mxu0 %v435
      %v542 = vpop.f32.mrf.mxu0
      %v543 = vadd.f32 %v373, %v542
      %v544 = vpop.f32.mrf.mxu0
      %v545 = vpop.f32.mrf.mxu0
      %v546 = vadd.f32 %v378, %v545
      %v547 = vpop.f32.mrf.mxu0
      %548 = vdwg.mxu0
      %v549 = vmax.f32 %v482, 0.0
      %v550 = vmax.f32 %v484, 0.0
      %v551 = vmax.f32 %v535, 0.0
      %v552 = vmax.f32 %v486, 0.0
      %v553 = vmax.f32 %v488, 0.0
      %v554 = vmax.f32 %v538, 0.0
      %v555 = vmax.f32 %v492, 0.0
      %v556 = vmax.f32 %v494, 0.0
      %v557 = vmax.f32 %v543, 0.0
      %v558 = vmax.f32 %v496, 0.0
      %v559 = vmax.f32 %v498, 0.0
      %v560 = vmax.f32 %v546, 0.0
      %v561 = vpack.c.bf16 %v552, %v549
      %v562 = vpack.c.bf16 %v553, %v550
      %v563 = vpack.c.bf16 %v554, %v551
      %v564 = vpack.c.bf16 %v558, %v555
      %v565 = vpack.c.bf16 %v559, %v556
      %v566 = vpack.c.bf16 %v560, %v557
      %v571 = vunpack.c.l.b16 %v561
      %v572 = vunpack.c.l.b16 %v562
      %v573 = vunpack.c.h.b16 %v561
      %v574 = vunpack.c.h.b16 %v562
      %v575 = vunpack.c.l.b16 %v564
      %v576 = vunpack.c.l.b16 %v565
      %v577 = vunpack.c.h.b16 %v564
      %v578 = vunpack.c.h.b16 %v565
      %v579 = vpack.c.b16 %v572, %v571
      %v580 = vpack.c.b16 %v574, %v573
      %v581 = vpack.c.b16 %v576, %v575
      %v582 = vpack.c.b16 %v578, %v577
      %587 = vst [vmem:[#allocation3] sm:$0xff] %v579
      %588 = vst [vmem:[#allocation3 + $0x8] sm:$0xff] %v580
      %589 = vst [vmem:[#allocation3 + $0x10] sm:$0xff] %v581
      %590 = vst [vmem:[#allocation3 + $0x18] sm:$0xff] %v582
      %v593 = vunpack.c.l.b16 %v563
      %v594 = vunpack.c.h.b16 %v563
      %v595 = vunpack.c.l.b16 %v566
      %v596 = vunpack.c.h.b16 %v566
      %v597 = vpack.c.b16 %v593, %v593
      %v598 = vpack.c.b16 %v594, %v594
      %v599 = vpack.c.b16 %v595, %v595
      %v600 = vpack.c.b16 %v596, %v596
      %601 = vrot.lane.b32.xlu0 %v579, 127
      %v602 = vpop.permute.xlu0 %601
      %603 = vrot.lane.b32.xlu0 %v597, 127
      %v604 = vpop.permute.xlu0 %603
      %605 = vrot.lane.b32.xlu0 %v580, 127
      %v606 = vpop.permute.xlu0 %605
      %607 = vrot.lane.b32.xlu0 %v598, 127
      %v608 = vpop.permute.xlu0 %607
      %609 = vrot.lane.b32.xlu0 %v581, 127
      %v610 = vpop.permute.xlu0 %609
      %611 = vrot.lane.b32.xlu0 %v599, 127
      %v612 = vpop.permute.xlu0 %611
      %613 = vrot.lane.b32.xlu0 %v582, 127
      %v614 = vpop.permute.xlu0 %613
      %615 = vrot.lane.b32.xlu0 %v600, 127
      %v616 = vpop.permute.xlu0 %615
      %v617 = vrot.slane %v602, 4
      %v618 = vrot.slane %v604, 4
      %v619 = vrot.slane %v606, 4
      %v620 = vrot.slane %v608, 4
      %v621 = vrot.slane %v610, 4
      %v622 = vrot.slane %v612, 4
      %v623 = vrot.slane %v614, 4
      %v624 = vrot.slane %v616, 4
      %v625 = vsel %vm234, %v617, %v618
      %v626 = vsel %vm236, %v602, %v625
      %v627 = vsel %vm234, %v619, %v620
      %v628 = vsel %vm236, %v606, %v627
      %v629 = vsel %vm234, %v621, %v622
      %v630 = vsel %vm236, %v610, %v629
      %v631 = vsel %vm234, %v623, %v624
      %v632 = vsel %vm236, %v614, %v631
      %637 = vst [vmem:[#allocation3 + $0x20] sm:$0xff] %v626
      %638 = vst [vmem:[#allocation3 + $0x28] sm:$0xff] %v628
      %639 = vst [vmem:[#allocation3 + $0x30] sm:$0xff] %v630
      %640 = vst [vmem:[#allocation3 + $0x38] sm:$0xff] %v632
      %641 = vrot.lane.b32.xlu0 %v579, 126
      %v642 = vpop.permute.xlu0 %641
      %643 = vrot.lane.b32.xlu0 %v597, 126
      %v644 = vpop.permute.xlu0 %643
      %645 = vrot.lane.b32.xlu0 %v580, 126
      %v646 = vpop.permute.xlu0 %645
      %647 = vrot.lane.b32.xlu0 %v598, 126
      %v648 = vpop.permute.xlu0 %647
      %649 = vrot.lane.b32.xlu0 %v581, 126
      %v650 = vpop.permute.xlu0 %649
      %651 = vrot.lane.b32.xlu0 %v599, 126
      %v652 = vpop.permute.xlu0 %651
      %653 = vrot.lane.b32.xlu0 %v582, 126
      %v654 = vpop.permute.xlu0 %653
      %655 = vrot.lane.b32.xlu0 %v600, 126
      %v656 = vpop.permute.xlu0 %655
      %v657 = vrot.slane %v642, 4
      %v658 = vrot.slane %v644, 4
      %v659 = vrot.slane %v646, 4
      %v660 = vrot.slane %v648, 4
      %v661 = vrot.slane %v650, 4
      %v662 = vrot.slane %v652, 4
      %v663 = vrot.slane %v654, 4
      %v664 = vrot.slane %v656, 4
      %v665 = vsel %vm234, %v657, %v658
      %v666 = vsel %vm250, %v642, %v665
      %v667 = vsel %vm234, %v659, %v660
      %v668 = vsel %vm250, %v646, %v667
      %v669 = vsel %vm234, %v661, %v662
      %v670 = vsel %vm250, %v650, %v669
      %v671 = vsel %vm234, %v663, %v664
      %v672 = vsel %vm250, %v654, %v671
      %677 = vst [vmem:[#allocation3 + $0x40] sm:$0xff] %v666
      %678 = vst [vmem:[#allocation3 + $0x48] sm:$0xff] %v668
      %679 = vst [vmem:[#allocation3 + $0x50] sm:$0xff] %v670
      %680 = vst [vmem:[#allocation3 + $0x58] sm:$0xff] %v672
      %681 = vrot.lane.b32.xlu0 %v579, 112
      %v682 = vpop.permute.xlu0 %681
      %683 = vrot.lane.b32.xlu0 %v597, 112
      %v684 = vpop.permute.xlu0 %683
      %685 = vrot.lane.b32.xlu0 %v580, 112
      %v686 = vpop.permute.xlu0 %685
      %687 = vrot.lane.b32.xlu0 %v598, 112
      %v688 = vpop.permute.xlu0 %687
      %689 = vrot.lane.b32.xlu0 %v581, 112
      %v690 = vpop.permute.xlu0 %689
      %691 = vrot.lane.b32.xlu0 %v599, 112
      %v692 = vpop.permute.xlu0 %691
      %693 = vrot.lane.b32.xlu0 %v582, 112
      %v694 = vpop.permute.xlu0 %693
      %695 = vrot.lane.b32.xlu0 %v600, 112
      %v696 = vpop.permute.xlu0 %695
      %v697 = vrot.slane %v682, 4
      %v698 = vrot.slane %v684, 4
      %v699 = vrot.slane %v686, 4
      %v700 = vrot.slane %v688, 4
      %v701 = vrot.slane %v690, 4
      %v702 = vrot.slane %v692, 4
      %v703 = vrot.slane %v694, 4
      %v704 = vrot.slane %v696, 4
      %v705 = vsel %vm234, %v697, %v698
      %v706 = vsel %vm264, %v682, %v705
      %v707 = vsel %vm234, %v699, %v700
      %v708 = vsel %vm264, %v686, %v707
      %v709 = vsel %vm234, %v701, %v702
      %v710 = vsel %vm264, %v690, %v709
      %v711 = vsel %vm234, %v703, %v704
      %v712 = vsel %vm264, %v694, %v711
      %717 = vst [vmem:[#allocation3 + $0x60] sm:$0xff] %v706
      %718 = vst [vmem:[#allocation3 + $0x68] sm:$0xff] %v708
      %719 = vst [vmem:[#allocation3 + $0x70] sm:$0xff] %v710
      %720 = vst [vmem:[#allocation3 + $0x78] sm:$0xff] %v712
      %721 = vrot.lane.b32.xlu0 %v579, 111
      %v722 = vpop.permute.xlu0 %721
      %723 = vrot.lane.b32.xlu0 %v597, 111
      %v724 = vpop.permute.xlu0 %723
      %725 = vrot.lane.b32.xlu0 %v580, 111
      %v726 = vpop.permute.xlu0 %725
      %727 = vrot.lane.b32.xlu0 %v598, 111
      %v728 = vpop.permute.xlu0 %727
      %729 = vrot.lane.b32.xlu0 %v581, 111
      %v730 = vpop.permute.xlu0 %729
      %731 = vrot.lane.b32.xlu0 %v599, 111
      %v732 = vpop.permute.xlu0 %731
      %733 = vrot.lane.b32.xlu0 %v582, 111
      %v734 = vpop.permute.xlu0 %733
      %735 = vrot.lane.b32.xlu0 %v600, 111
      %v736 = vpop.permute.xlu0 %735
      %v737 = vrot.slane %v722, 4
      %v738 = vrot.slane %v724, 4
      %v739 = vrot.slane %v726, 4
      %v740 = vrot.slane %v728, 4
      %v741 = vrot.slane %v730, 4
      %v742 = vrot.slane %v732, 4
      %v743 = vrot.slane %v734, 4
      %v744 = vrot.slane %v736, 4
      %v745 = vsel %vm234, %v737, %v738
      %v746 = vsel %vm278, %v722, %v745
      %v747 = vsel %vm234, %v739, %v740
      %v748 = vsel %vm278, %v726, %v747
      %v749 = vsel %vm234, %v741, %v742
      %v750 = vsel %vm278, %v730, %v749
      %v751 = vsel %vm234, %v743, %v744
      %v752 = vsel %vm278, %v734, %v751
      %757 = vst [vmem:[#allocation3 + $0x80] sm:$0xff] %v746
      %758 = vst [vmem:[#allocation3 + $0x88] sm:$0xff] %v748
      %759 = vst [vmem:[#allocation3 + $0x90] sm:$0xff] %v750
      %760 = vst [vmem:[#allocation3 + $0x98] sm:$0xff] %v752
      %761 = vrot.lane.b32.xlu0 %v579, 110
      %v762 = vpop.permute.xlu0 %761
      %763 = vrot.lane.b32.xlu0 %v597, 110
      %v764 = vpop.permute.xlu0 %763
      %765 = vrot.lane.b32.xlu0 %v580, 110
      %v766 = vpop.permute.xlu0 %765
      %767 = vrot.lane.b32.xlu0 %v598, 110
      %v768 = vpop.permute.xlu0 %767
      %769 = vrot.lane.b32.xlu0 %v581, 110
      %v770 = vpop.permute.xlu0 %769
      %771 = vrot.lane.b32.xlu0 %v599, 110
      %v772 = vpop.permute.xlu0 %771
      %773 = vrot.lane.b32.xlu0 %v582, 110
      %v774 = vpop.permute.xlu0 %773
      %775 = vrot.lane.b32.xlu0 %v600, 110
      %v776 = vpop.permute.xlu0 %775
      %v777 = vrot.slane %v762, 4
      %v778 = vrot.slane %v764, 4
      %v779 = vrot.slane %v766, 4
      %v780 = vrot.slane %v768, 4
      %v781 = vrot.slane %v770, 4
      %v782 = vrot.slane %v772, 4
      %v783 = vrot.slane %v774, 4
      %v784 = vrot.slane %v776, 4
      %v785 = vsel %vm234, %v777, %v778
      %v786 = vsel %vm292, %v762, %v785
      %v787 = vsel %vm234, %v779, %v780
      %v788 = vsel %vm292, %v766, %v787
      %v789 = vsel %vm234, %v781, %v782
      %v790 = vsel %vm292, %v770, %v789
      %v791 = vsel %vm234, %v783, %v784
      %v792 = vsel %vm292, %v774, %v791
      %797 = vst [vmem:[#allocation3 + $0xa0] sm:$0xff] %v786
      %798 = vst [vmem:[#allocation3 + $0xa8] sm:$0xff] %v788
      %799 = vst [vmem:[#allocation3 + $0xb0] sm:$0xff] %v790
      %800 = vst [vmem:[#allocation3 + $0xb8] sm:$0xff] %v792
      %801 = vrot.lane.b32.xlu0 %v579, 96
      %v802 = vpop.permute.xlu0 %801
      %803 = vrot.lane.b32.xlu0 %v597, 96
      %v804 = vpop.permute.xlu0 %803
      %805 = vrot.lane.b32.xlu0 %v580, 96
      %v806 = vpop.permute.xlu0 %805
      %807 = vrot.lane.b32.xlu0 %v598, 96
      %v808 = vpop.permute.xlu0 %807
      %809 = vrot.lane.b32.xlu0 %v581, 96
      %v810 = vpop.permute.xlu0 %809
      %811 = vrot.lane.b32.xlu0 %v599, 96
      %v812 = vpop.permute.xlu0 %811
      %813 = vrot.lane.b32.xlu0 %v582, 96
      %v814 = vpop.permute.xlu0 %813
      %815 = vrot.lane.b32.xlu0 %v600, 96
      %v816 = vpop.permute.xlu0 %815
      %v817 = vrot.slane %v802, 4
      %v818 = vrot.slane %v804, 4
      %v819 = vrot.slane %v806, 4
      %v820 = vrot.slane %v808, 4
      %v821 = vrot.slane %v810, 4
      %v822 = vrot.slane %v812, 4
      %v823 = vrot.slane %v814, 4
      %v824 = vrot.slane %v816, 4
      %v825 = vsel %vm234, %v817, %v818
      %v826 = vsel %vm306, %v802, %v825
      %v827 = vsel %vm234, %v819, %v820
      %v828 = vsel %vm306, %v806, %v827
      %v829 = vsel %vm234, %v821, %v822
      %v830 = vsel %vm306, %v810, %v829
      %v831 = vsel %vm234, %v823, %v824
      %v832 = vsel %vm306, %v814, %v831
      %837 = vst [vmem:[#allocation3 + $0xc0] sm:$0xff] %v826
      %838 = vst [vmem:[#allocation3 + $0xc8] sm:$0xff] %v828
      %839 = vst [vmem:[#allocation3 + $0xd0] sm:$0xff] %v830
      %840 = vst [vmem:[#allocation3 + $0xd8] sm:$0xff] %v832
      %841 = vrot.lane.b32.xlu0 %v579, 95
      %v842 = vpop.permute.xlu0 %841
      %843 = vrot.lane.b32.xlu0 %v597, 95
      %v844 = vpop.permute.xlu0 %843
      %845 = vrot.lane.b32.xlu0 %v580, 95
      %v846 = vpop.permute.xlu0 %845
      %847 = vrot.lane.b32.xlu0 %v598, 95
      %v848 = vpop.permute.xlu0 %847
      %849 = vrot.lane.b32.xlu0 %v581, 95
      %v850 = vpop.permute.xlu0 %849
      %851 = vrot.lane.b32.xlu0 %v599, 95
      %v852 = vpop.permute.xlu0 %851
      %853 = vrot.lane.b32.xlu0 %v582, 95
      %v854 = vpop.permute.xlu0 %853
      %855 = vrot.lane.b32.xlu0 %v600, 95
      %v856 = vpop.permute.xlu0 %855
      %v857 = vrot.slane %v842, 4
      %v858 = vrot.slane %v844, 4
      %v859 = vrot.slane %v846, 4
      %v860 = vrot.slane %v848, 4
      %v861 = vrot.slane %v850, 4
      %v862 = vrot.slane %v852, 4
      %v863 = vrot.slane %v854, 4
      %v864 = vrot.slane %v856, 4
      %v865 = vsel %vm234, %v857, %v858
      %v866 = vsel %vm320, %v842, %v865
      %v867 = vsel %vm234, %v859, %v860
      %v868 = vsel %vm320, %v846, %v867
      %v869 = vsel %vm234, %v861, %v862
      %v870 = vsel %vm320, %v850, %v869
      %v871 = vsel %vm234, %v863, %v864
      %v872 = vsel %vm320, %v854, %v871
      %877 = vst [vmem:[#allocation3 + $0xe0] sm:$0xff] %v866
      %878 = vst [vmem:[#allocation3 + $0xe8] sm:$0xff] %v868
      %879 = vst [vmem:[#allocation3 + $0xf0] sm:$0xff] %v870
      %880 = vst [vmem:[#allocation3 + $0xf8] sm:$0xff] %v872
      %881 = vrot.lane.b32.xlu0 %v579, 94
      %v882 = vpop.permute.xlu0 %881
      %883 = vrot.lane.b32.xlu0 %v597, 94
      %v884 = vpop.permute.xlu0 %883
      %885 = vrot.lane.b32.xlu0 %v580, 94
      %v886 = vpop.permute.xlu0 %885
      %887 = vrot.lane.b32.xlu0 %v598, 94
      %v888 = vpop.permute.xlu0 %887
      %889 = vrot.lane.b32.xlu0 %v581, 94
      %v890 = vpop.permute.xlu0 %889
      %891 = vrot.lane.b32.xlu0 %v599, 94
      %v892 = vpop.permute.xlu0 %891
      %893 = vrot.lane.b32.xlu0 %v582, 94
      %v894 = vpop.permute.xlu0 %893
      %895 = vrot.lane.b32.xlu0 %v600, 94
      %v896 = vpop.permute.xlu0 %895
      %v897 = vrot.slane %v882, 4
      %v898 = vrot.slane %v884, 4
      %v899 = vrot.slane %v886, 4
      %v900 = vrot.slane %v888, 4
      %v901 = vrot.slane %v890, 4
      %v902 = vrot.slane %v892, 4
      %v903 = vrot.slane %v894, 4
      %v904 = vrot.slane %v896, 4
      %v905 = vsel %vm234, %v897, %v898
      %v906 = vsel %vm334, %v882, %v905
      %v907 = vsel %vm234, %v899, %v900
      %v908 = vsel %vm334, %v886, %v907
      %v909 = vsel %vm234, %v901, %v902
      %v910 = vsel %vm334, %v890, %v909
      %v911 = vsel %vm234, %v903, %v904
      %v912 = vsel %vm334, %v894, %v911
      %917 = vst [vmem:[#allocation3 + $0x100] sm:$0xff] %v906
      %918 = vst [vmem:[#allocation3 + $0x108] sm:$0xff] %v908
      %919 = vst [vmem:[#allocation3 + $0x110] sm:$0xff] %v910
      %920 = vst [vmem:[#allocation3 + $0x118] sm:$0xff] %v912
      %v921 = vld [vmem:[%s2] sm:$0xff]
      %v922 = vld [vmem:[%s2 + $0x8] sm:$0xf]
      %v923 = vld [vmem:[%s2 + $0xc] sm:$0xff]
      %v924 = vld [vmem:[%s2 + $0x14] sm:$0xf]
      %v925 = vld [vmem:[%s2 + $0x18] sm:$0xff]
      %v926 = vld [vmem:[%s2 + $0x20] sm:$0xf]
      %v927 = vld [vmem:[%s2 + $0x24] sm:$0xff]
      %v928 = vld [vmem:[%s2 + $0x2c] sm:$0xf]
      %v929 = vld [vmem:[#allocation3] sm:$0xff]
      %v930 = vld [vmem:[#allocation3 + $0x8] sm:$0xff]
      %v931 = vld [vmem:[#allocation3 + $0x10] sm:$0xff]
      %v932 = vld [vmem:[#allocation3 + $0x18] sm:$0xff]
      %v933 = vld [vmem:[#allocation3 + $0x20] sm:$0xff]
      %v934 = vld [vmem:[#allocation3 + $0x28] sm:$0xff]
      %v935 = vld [vmem:[#allocation3 + $0x30] sm:$0xff]
      %v936 = vld [vmem:[#allocation3 + $0x38] sm:$0xff]
      %v937 = vld [vmem:[#allocation3 + $0x40] sm:$0xff]
      %v938 = vld [vmem:[#allocation3 + $0x48] sm:$0xff]
      %v939 = vld [vmem:[#allocation3 + $0x50] sm:$0xff]
      %v940 = vld [vmem:[#allocation3 + $0x58] sm:$0xff]
      %v941 = vld [vmem:[#allocation3 + $0x60] sm:$0xff]
      %v942 = vld [vmem:[#allocation3 + $0x68] sm:$0xff]
      %v943 = vld [vmem:[#allocation3 + $0x70] sm:$0xff]
      %v944 = vld [vmem:[#allocation3 + $0x78] sm:$0xff]
      %v945 = vld [vmem:[#allocation3 + $0x80] sm:$0xff]
      %v946 = vld [vmem:[#allocation3 + $0x88] sm:$0xff]
      %v947 = vld [vmem:[#allocation3 + $0x90] sm:$0xff]
      %v948 = vld [vmem:[#allocation3 + $0x98] sm:$0xff]
      %v949 = vld [vmem:[#allocation3 + $0xa0] sm:$0xff]
      %v950 = vld [vmem:[#allocation3 + $0xa8] sm:$0xff]
      %v951 = vld [vmem:[#allocation3 + $0xb0] sm:$0xff]
      %v952 = vld [vmem:[#allocation3 + $0xb8] sm:$0xff]
      %v953 = vld [vmem:[#allocation3 + $0xc0] sm:$0xff]
      %v954 = vld [vmem:[#allocation3 + $0xc8] sm:$0xff]
      %v955 = vld [vmem:[#allocation3 + $0xd0] sm:$0xff]
      %v956 = vld [vmem:[#allocation3 + $0xd8] sm:$0xff]
      %v957 = vld [vmem:[#allocation3 + $0xe0] sm:$0xff]
      %v958 = vld [vmem:[#allocation3 + $0xe8] sm:$0xff]
      %v959 = vld [vmem:[#allocation3 + $0xf0] sm:$0xff]
      %v960 = vld [vmem:[#allocation3 + $0xf8] sm:$0xff]
      %v961 = vld [vmem:[#allocation3 + $0x100] sm:$0xff]
      %v962 = vld [vmem:[#allocation3 + $0x108] sm:$0xff]
      %v963 = vld [vmem:[#allocation3 + $0x110] sm:$0xff]
      %v964 = vld [vmem:[#allocation3 + $0x118] sm:$0xff]
      %v965 = vld [vmem:[#allocation3 + $0x120] sm:$0x33]
      %v966 = vld [vmem:[%s3] sm:$0xff]
      %v967 = vld [vmem:[%s3 + $0x8] sm:$0xff]
      %v968 = vld [vmem:[%s3 + $0x10] sm:$0xff]
      %v969 = vld [vmem:[%s3 + $0x18] sm:$0xff]
      %971 = vset.pattern.permute.xlu0 1
      %972 = vperm.xlu0 %971, %v966
      %v973 = vpop.permute.xlu0 %972
      %976 = vset.pattern.permute.xlu0 1
      %977 = vperm.xlu0 %976, %v967
      %v978 = vpop.permute.xlu0 %977
      %981 = vset.pattern.permute.xlu0 1
      %982 = vperm.xlu0 %981, %v968
      %v983 = vpop.permute.xlu0 %982
      %986 = vset.pattern.permute.xlu0 1
      %987 = vperm.xlu0 %986, %v969
      %v988 = vpop.permute.xlu0 %987
      %v998 = vunpack.c.l.b16 %v921
      %v999 = vunpack.c.h.b16 %v921
      %v1000 = vunpack.c.l.b16 %v922
      %v1001 = vunpack.c.l.b16 %v923
      %v1002 = vunpack.c.h.b16 %v923
      %v1003 = vunpack.c.l.b16 %v924
      %v1004 = vunpack.c.l.b16 %v925
      %v1005 = vunpack.c.h.b16 %v925
      %v1006 = vunpack.c.l.b16 %v926
      %v1007 = vunpack.c.l.b16 %v927
      %v1008 = vunpack.c.h.b16 %v927
      %v1009 = vunpack.c.l.b16 %v928
      %v1010 = vpack.c.b16 %v1001, %v998
      %v1011 = vpack.c.b16 %v1002, %v999
      %v1012 = vpack.c.b16 %v1003, %v1000
      %v1013 = vpack.c.b16 %v1007, %v1004
      %v1014 = vpack.c.b16 %v1008, %v1005
      %v1015 = vpack.c.b16 %v1009, %v1006
      %v1057 = vunpack.c.l.b16 %v929
      %v1058 = vunpack.c.h.b16 %v929
      %v1059 = vunpack.c.l.b16 %v930
      %v1060 = vunpack.c.h.b16 %v930
      %v1061 = vunpack.c.l.b16 %v931
      %v1062 = vunpack.c.h.b16 %v931
      %v1063 = vunpack.c.l.b16 %v932
      %v1064 = vunpack.c.h.b16 %v932
      %v1065 = vunpack.c.l.b16 %v933
      %v1066 = vunpack.c.h.b16 %v933
      %v1067 = vunpack.c.l.b16 %v934
      %v1068 = vunpack.c.h.b16 %v934
      %v1069 = vunpack.c.l.b16 %v935
      %v1070 = vunpack.c.h.b16 %v935
      %v1071 = vunpack.c.l.b16 %v936
      %v1072 = vunpack.c.h.b16 %v936
      %v1073 = vunpack.c.l.b16 %v937
      %v1074 = vunpack.c.h.b16 %v937
      %v1075 = vunpack.c.l.b16 %v938
      %v1076 = vunpack.c.h.b16 %v938
      %v1077 = vunpack.c.l.b16 %v939
      %v1078 = vunpack.c.h.b16 %v939
      %v1079 = vunpack.c.l.b16 %v940
      %v1080 = vunpack.c.h.b16 %v940
      %v1081 = vunpack.c.l.b16 %v941
      %v1082 = vunpack.c.h.b16 %v941
      %v1083 = vunpack.c.l.b16 %v942
      %v1084 = vunpack.c.h.b16 %v942
      %v1085 = vunpack.c.l.b16 %v943
      %v1086 = vunpack.c.h.b16 %v943
      %v1087 = vunpack.c.l.b16 %v944
      %v1088 = vunpack.c.h.b16 %v944
      %v1089 = vunpack.c.l.b16 %v945
      %v1090 = vunpack.c.h.b16 %v945
      %v1091 = vunpack.c.l.b16 %v946
      %v1092 = vunpack.c.h.b16 %v946
      %v1093 = vunpack.c.l.b16 %v947
      %v1094 = vunpack.c.h.b16 %v947
      %v1095 = vunpack.c.l.b16 %v948
      %v1096 = vunpack.c.h.b16 %v948
      %v1097 = vunpack.c.l.b16 %v949
      %v1098 = vunpack.c.h.b16 %v949
      %v1099 = vunpack.c.l.b16 %v950
      %v1100 = vunpack.c.h.b16 %v950
      %v1101 = vunpack.c.l.b16 %v951
      %v1102 = vunpack.c.h.b16 %v951
      %v1103 = vunpack.c.l.b16 %v952
      %v1104 = vunpack.c.h.b16 %v952
      %v1105 = vunpack.c.l.b16 %v953
      %v1106 = vunpack.c.h.b16 %v953
      %v1107 = vunpack.c.l.b16 %v954
      %v1108 = vunpack.c.h.b16 %v954
      %v1109 = vunpack.c.l.b16 %v955
      %v1110 = vunpack.c.h.b16 %v955
      %v1111 = vunpack.c.l.b16 %v956
      %v1112 = vunpack.c.h.b16 %v956
      %v1113 = vunpack.c.l.b16 %v957
      %v1114 = vunpack.c.h.b16 %v957
      %v1115 = vunpack.c.l.b16 %v958
      %v1116 = vunpack.c.h.b16 %v958
      %v1117 = vunpack.c.l.b16 %v959
      %v1118 = vunpack.c.h.b16 %v959
      %v1119 = vunpack.c.l.b16 %v960
      %v1120 = vunpack.c.h.b16 %v960
      %v1121 = vunpack.c.l.b16 %v961
      %v1122 = vunpack.c.h.b16 %v961
      %v1123 = vunpack.c.l.b16 %v962
      %v1124 = vunpack.c.h.b16 %v962
      %v1125 = vunpack.c.l.b16 %v963
      %v1126 = vunpack.c.h.b16 %v963
      %v1127 = vunpack.c.l.b16 %v964
      %v1128 = vunpack.c.h.b16 %v964
      %v1129 = vunpack.c.l.b16 %v965
      %v1130 = vunpack.c.h.b16 %v965
      %v1131 = vpack.c.b16 %v1059, %v1057
      %v1132 = vpack.c.b16 %v1060, %v1058
      %v1133 = vpack.c.b16 %v1063, %v1061
      %v1134 = vpack.c.b16 %v1064, %v1062
      %v1135 = vpack.c.b16 %v1067, %v1065
      %v1136 = vpack.c.b16 %v1068, %v1066
      %v1137 = vpack.c.b16 %v1071, %v1069
      %v1138 = vpack.c.b16 %v1072, %v1070
      %v1139 = vpack.c.b16 %v1075, %v1073
      %v1140 = vpack.c.b16 %v1076, %v1074
      %v1141 = vpack.c.b16 %v1079, %v1077
      %v1142 = vpack.c.b16 %v1080, %v1078
      %v1143 = vpack.c.b16 %v1083, %v1081
      %v1144 = vpack.c.b16 %v1084, %v1082
      %v1145 = vpack.c.b16 %v1087, %v1085
      %v1146 = vpack.c.b16 %v1088, %v1086
      %v1147 = vpack.c.b16 %v1091, %v1089
      %v1148 = vpack.c.b16 %v1092, %v1090
      %v1149 = vpack.c.b16 %v1095, %v1093
      %v1150 = vpack.c.b16 %v1096, %v1094
      %v1151 = vpack.c.b16 %v1099, %v1097
      %v1152 = vpack.c.b16 %v1100, %v1098
      %v1153 = vpack.c.b16 %v1103, %v1101
      %v1154 = vpack.c.b16 %v1104, %v1102
      %v1155 = vpack.c.b16 %v1107, %v1105
      %v1156 = vpack.c.b16 %v1108, %v1106
      %v1157 = vpack.c.b16 %v1111, %v1109
      %v1158 = vpack.c.b16 %v1112, %v1110
      %v1159 = vpack.c.b16 %v1115, %v1113
      %v1160 = vpack.c.b16 %v1116, %v1114
      %v1161 = vpack.c.b16 %v1119, %v1117
      %v1162 = vpack.c.b16 %v1120, %v1118
      %v1163 = vpack.c.b16 %v1123, %v1121
      %v1164 = vpack.c.b16 %v1124, %v1122
      %v1165 = vpack.c.b16 %v1127, %v1125
      %v1166 = vpack.c.b16 %v1128, %v1126
      %v1167 = vpack.c.b16 %v1129, %v1129
      %v1168 = vpack.c.b16 %v1130, %v1130
      %v1206 = vsel %vm430, %v1012, 0
      %v1209 = vsel %vm430, %v1015, 0
      %v1212 = vsel %vm437, %v1167, 0
      %v1215 = vsel %vm437, %v1168, 0
      %1217 = vmatprep.subr.bf16.mxu0 %v1146
      %1218 = vmatpush1.bf16.msra.mxu0 %v1145
      %1219 = vmatprep.subr.bf16.mxu0 %v1144
      %1220 = vmatpush1.bf16.msra.mxu0 %v1143
      %1221 = vmatprep.subr.bf16.mxu0 %v1142
      %1222 = vmatpush1.bf16.msra.mxu0 %v1141
      %1223 = vmatprep.subr.bf16.mxu0 %v1140
      %1224 = vmatpush1.bf16.msra.mxu0 %v1139
      %1225 = vmatprep.subr.bf16.mxu0 %v1138
      %1226 = vmatpush1.bf16.msra.mxu0 %v1137
      %1227 = vmatprep.subr.bf16.mxu0 %v1136
      %1228 = vmatpush1.bf16.msra.mxu0 %v1135
      %1229 = vmatprep.subr.bf16.mxu0 %v1134
      %1230 = vmatpush1.bf16.msra.mxu0 %v1133
      %1231 = vmatprep.subr.bf16.mxu0 %v1132
      %1232 = vmatpush1.bf16.msra.mxu0 %v1131
      %1233 = vmatprep.subr.bf16.mxu0 %v1162
      %1234 = vmatpush2.bf16.msra.mxu0 %v1161
      %1235 = vmatprep.subr.bf16.mxu0 %v1160
      %1236 = vmatpush2.bf16.msra.mxu0 %v1159
      %1237 = vmatprep.subr.bf16.mxu0 %v1158
      %1238 = vmatpush2.bf16.msra.mxu0 %v1157
      %1239 = vmatprep.subr.bf16.mxu0 %v1156
      %1240 = vmatpush2.bf16.msra.mxu0 %v1155
      %1241 = vmatprep.subr.bf16.mxu0 %v1154
      %1242 = vmatpush2.bf16.msra.mxu0 %v1153
      %1243 = vmatprep.subr.bf16.mxu0 %v1152
      %1244 = vmatpush2.bf16.msra.mxu0 %v1151
      %1245 = vmatprep.subr.bf16.mxu0 %v1150
      %1246 = vmatpush2.bf16.msra.mxu0 %v1149
      %1247 = vmatprep.subr.bf16.mxu0 %v1148
      %1248 = vmatpush2.bf16.msra.mxu0 %v1147
      %1249 = vmatprep.mubr.bf16.mxu0 %v1011
      %1250 = vmatmul.mubr.bf16.gmra.mxu0 %v1010
      %v1251 = vpop.f32.mrf.mxu0
      %v1252 = vadd.f32 %v973, %v1251
      %v1253 = vpop.f32.mrf.mxu0
      %v1254 = vadd.f32 %v973, %v1253
      %v1255 = vpop.f32.mrf.mxu0
      %v1256 = vadd.f32 %v978, %v1255
      %v1257 = vpop.f32.mrf.mxu0
      %v1258 = vadd.f32 %v978, %v1257
      %1259 = vmatprep.mubr.bf16.mxu0 %v1014
      %1260 = vmatmul.mubr.bf16.gmra.mxu0 %v1013
      %v1261 = vpop.f32.mrf.mxu0
      %v1262 = vadd.f32 %v983, %v1261
      %v1263 = vpop.f32.mrf.mxu0
      %v1264 = vadd.f32 %v983, %v1263
      %v1265 = vpop.f32.mrf.mxu0
      %v1266 = vadd.f32 %v988, %v1265
      %v1267 = vpop.f32.mrf.mxu0
      %v1268 = vadd.f32 %v988, %v1267
      %1269 = vdwg.mxu0
      %1270 = vmatprep.subr.bf16.mxu0 0
      %1271 = vmatpush1.bf16.msra.mxu0 0
      %1272 = vmatprep.subr.bf16.mxu0 0
      %1273 = vmatpush1.bf16.msra.mxu0 0
      %1274 = vmatprep.subr.bf16.mxu0 0
      %1275 = vmatpush1.bf16.msra.mxu0 0
      %1276 = vmatprep.subr.bf16.mxu0 0
      %1277 = vmatpush1.bf16.msra.mxu0 0
      %1278 = vmatprep.subr.bf16.mxu0 0
      %1279 = vmatpush1.bf16.msra.mxu0 0
      %1280 = vmatprep.subr.bf16.mxu0 %v1215
      %1281 = vmatpush1.bf16.msra.mxu0 %v1212
      %1282 = vmatprep.subr.bf16.mxu0 %v1166
      %1283 = vmatpush1.bf16.msra.mxu0 %v1165
      %1284 = vmatprep.subr.bf16.mxu0 %v1164
      %1285 = vmatpush1.bf16.msra.mxu0 %v1163
      %1286 = vmatprep.subr.bf16.mxu0 0
      %1287 = vmatpush2.bf16.msra.mxu0 0
      %1288 = vmatprep.subr.bf16.mxu0 0
      %1289 = vmatpush2.bf16.msra.mxu0 0
      %1290 = vmatprep.subr.bf16.mxu0 0
      %1291 = vmatpush2.bf16.msra.mxu0 0
      %1292 = vmatprep.subr.bf16.mxu0 0
      %1293 = vmatpush2.bf16.msra.mxu0 0
      %1294 = vmatprep.subr.bf16.mxu0 0
      %1295 = vmatpush2.bf16.msra.mxu0 0
      %1296 = vmatprep.subr.bf16.mxu0 0
      %1297 = vmatpush2.bf16.msra.mxu0 0
      %1298 = vmatprep.subr.bf16.mxu0 0
      %1299 = vmatpush2.bf16.msra.mxu0 0
      %1300 = vmatprep.subr.bf16.mxu0 0
      %1301 = vmatpush2.bf16.msra.mxu0 0
      %1302 = vmatprep.mubr.bf16.mxu0 0
      %1303 = vmatmul.mubr.bf16.gmra.mxu0 %v1206
      %v1304 = vpop.f32.mrf.mxu0
      %v1305 = vadd.f32 %v1252, %v1304
      %v1306 = vpop.f32.mrf.mxu0
      %v1307 = vadd.f32 %v1254, %v1306
      %v1308 = vpop.f32.mrf.mxu0
      %v1309 = vadd.f32 %v1256, %v1308
      %v1310 = vpop.f32.mrf.mxu0
      %v1311 = vadd.f32 %v1258, %v1310
      %1312 = vmatprep.mubr.bf16.mxu0 0
      %1313 = vmatmul.mubr.bf16.gmra.mxu0 %v1209
      %v1314 = vpop.f32.mrf.mxu0
      %v1315 = vadd.f32 %v1262, %v1314
      %v1316 = vpop.f32.mrf.mxu0
      %v1317 = vadd.f32 %v1264, %v1316
      %v1318 = vpop.f32.mrf.mxu0
      %v1319 = vadd.f32 %v1266, %v1318
      %v1320 = vpop.f32.mrf.mxu0
      %v1321 = vadd.f32 %v1268, %v1320
      %1322 = vdwg.mxu0
      %v1323 = vmax.f32 %v1305, 0.0
      %v1324 = vmax.f32 %v1307, 0.0
      %v1325 = vmax.f32 %v1309, 0.0
      %v1326 = vmax.f32 %v1311, 0.0
      %v1327 = vmax.f32 %v1315, 0.0
      %v1328 = vmax.f32 %v1317, 0.0
      %v1329 = vmax.f32 %v1319, 0.0
      %v1330 = vmax.f32 %v1321, 0.0
      %1331 = vst [vmem:[%s197] sm:$0xff] %v1323
      %1332 = vst [vmem:[%s197 + $0x8] sm:$0xff] %v1324
      %1333 = vst [vmem:[%s197 + $0x10] sm:$0xff] %v1325
      %1334 = vst [vmem:[%s197 + $0x18] sm:$0xff] %v1326
      %1335 = vst [vmem:[%s197 + $0x20] sm:$0xff] %v1327
      %1336 = vst [vmem:[%s197 + $0x28] sm:$0xff] %v1328
      %1337 = vst [vmem:[%s197 + $0x30] sm:$0xff] %v1329
      %1338 = vst [vmem:[%s197 + $0x38] sm:$0xff] %v1330
      %p1339 = scmp.lt.s32.totalorder %s15, 1
      %s1340 = scalar_select %p1339, %s15, 1
      %s1341 = smul.addr %s1340, 8
      %s1342 = smul.addr %s1341, 8
      %s1343 = scalar_lea.vmem %s4, %s1342
      // Predicated region
      $region37: #{residual_block_crop_forward.1} parent=35 // pred_check
        %p1344 = pneg %p122
      $region38: #{residual_block_crop_forward.1} parent=35 // pred_check_branch
        %1346 = sbr.rel (%p1344) target = $region40
      $region39: #{residual_block_crop_forward.1} parent=35 // pred_region
        _
      $region40: #{residual_block_crop_forward.1} parent=35 // pred_fallthru
        _
    $region36: #{residual_block_crop_forward.1} parent=5 // pred_fallthru
      _
    %p1347 = scmp.le.s32.totalorder 2, %s10
    // Predicated region
    $region41: #{residual_block_crop_forward.1} parent=5 // pred_check
      %p1348 = pneg %p1347
    $region42: #{residual_block_crop_forward.1} parent=5 // pred_check_branch
      %1350 = sbr.rel (%p1348) target = $region44
    $region43: #{residual_block_crop_forward.1} parent=5 // pred_region
      %s1351 = ssub.s32 %s10, 2
      // Predicated region
      $region45: #{residual_block_crop_forward.1} parent=43 // pred_check
        %p1352 = pneg %p128
      $region46: #{residual_block_crop_forward.1} parent=43 // pred_check_branch
        %1354 = sbr.rel (%p1352) target = $region48
      $region47: #{residual_block_crop_forward.1} parent=43 // pred_region
        %p1355 = scmp.lt.s32.totalorder %s16, 1
        %s1356 = scalar_select %p1355, %s16, 1
        %s1357 = smul.addr %s1356, 8
        %s1358 = smul.addr %s1357, 8
        %s1359 = scalar_lea.vmem %s4, %s1358
      $region48: #{residual_block_crop_forward.1} parent=43 // pred_fallthru
        _
    $region44: #{residual_block_crop_forward.1} parent=5 // pred_fallthru
      _
  $region6: #{residual_block_crop_forward.1} parent=0 // loop_footer
    %s14 = sadd.s32 1, %s10
  $region7: #{residual_block_crop_forward.1} parent=0 // loop_footer_branch
    %9 = sbr.rel target = $region3
  $region8: #{residual_block_crop_forward.1} parent=0 // loop_exit
    _

</llo_original>
